<compile_context>
chip_gen: v5e
topology: v5e:2x2
jax: 0.10.0
libtpu: 0.0.40
codegen_flags: <defaults>
</compile_context>

<pallas_src>
import jax
import jax.numpy as jnp
from jax import lax
from jax.experimental import pallas as pl
from jax.experimental.pallas import tpu as pltpu


# ---------------------------------------------------------------------------
# Fused kernel: num_layers LSTM layers + Linear + Softmax, time-chunked grid.
# ---------------------------------------------------------------------------
def make_fused_kernel(num_layers, TT, B, H):
    """TT = timesteps per grid chunk, B = padded batch (multiple of 8).
    Input rows within a chunk are time-major: rows [t*B : (t+1)*B] = timestep t."""
    G = 4 * H

    def kernel(x_ref, *refs):
        # refs layout (after x_ref):
        #   [wih_0, whh_0, b_0, ..., wih_{L-1}, whh_{L-1}, b_{L-1},
        #    lin_w, lin_b, out_ref, hseq_scr, xproj_scr, h_scr, c_scr]
        # x_ref    : (TT*B, D)     time-major input chunk (f32)
        # wih_l    : (D_in, 4H)    bf16, gates (i,f,g,o) along last axis
        # whh_l    : (H, 4H)       bf16
        # b_l      : (1, 4H)       f32 combined bias (b_ih + b_hh)
        # lin_w    : (H, O) bf16, lin_b: (1, O) f32
        # out_ref  : (B, O)        softmax output (f32)
        # hseq_scr : (TT*B, H)     hidden sequence handed to the next layer
        # xproj_scr: (TT*B, 4H)    hoisted input projection
        # h_scr/c_scr : (L, B, H)  per-layer state carried across chunks
        nl = num_layers
        lin_w_ref = refs[3 * nl]
        lin_b_ref = refs[3 * nl + 1]
        out_ref = refs[3 * nl + 2]
        hseq_scr = refs[3 * nl + 3]
        xproj_scr = refs[3 * nl + 4]
        h_scr = refs[3 * nl + 5]
        c_scr = refs[3 * nl + 6]

        chunk = pl.program_id(0)

        @pl.when(chunk == 0)
        def _():
            h_scr[...] = jnp.zeros_like(h_scr)
            c_scr[...] = jnp.zeros_like(c_scr)

        # Loop-invariant lane mask selecting the tanh ("g") gate, lanes [2H, 3H).
        lane = lax.broadcasted_iota(jnp.int32, (B, G), 1)
        g_mask = (lane >= 2 * H) & (lane < 3 * H)

        for l in range(nl):
            wih_ref, whh_ref, b_ref = refs[3 * l], refs[3 * l + 1], refs[3 * l + 2]

            # --- hoisted input projection: one bf16 MXU matmul per chunk, f32 accum ---
            seq_in = x_ref[...] if l == 0 else hseq_scr[...]          # (TT*B, D_in)
            xproj_scr[...] = (
                jnp.dot(seq_in.astype(jnp.bfloat16), wih_ref[...],
                        preferred_element_type=jnp.float32)
                + b_ref[...]                                          # bias broadcast
            )

            whh = whh_ref[...]                                        # (H, 4H) bf16
            is_last = l == nl - 1

            def step(t, carry, _whh=whh, _is_last=is_last):
                h, c = carry                                          # (B, H) f32 each
                row = pl.multiple_of(t * B, B)                        # sublane-aligned
                gates = xproj_scr[pl.ds(row, B), :] + jnp.dot(
                    h.astype(jnp.bfloat16), _whh,
                    preferred_element_type=jnp.float32)               # (B, 4H) f32
                # One masked activation pass over the full lane-dense gate tensor.
                act = jnp.where(g_mask, jnp.tanh(gates), jax.nn.sigmoid(gates))
                i_g = act[:, 0 * H:1 * H]
                f_g = act[:, 1 * H:2 * H]
                g_g = act[:, 2 * H:3 * H]
                o_g = act[:, 3 * H:4 * H]
                c_new = f_g * c + i_g * g_g
                h_new = o_g * jnp.tanh(c_new)
                if not _is_last:
                    # only intermediate layers need the full hidden sequence
                    hseq_scr[pl.ds(row, B), :] = h_new
                return (h_new, c_new)

            h_f, c_f = lax.fori_loop(0, TT, step, (h_scr[l], c_scr[l]),
                                     unroll=(TT if TT <= 8 else 8))
            h_scr[l] = h_f
            c_scr[l] = c_f

        # --- head (last chunk only): dropout(eval)=identity, Linear + exact Softmax ---
        @pl.when(chunk == pl.num_programs(0) - 1)
        def _():
            h_last = h_scr[nl - 1]
            logits = (jnp.dot(h_last.astype(jnp.bfloat16), lin_w_ref[...],
                              preferred_element_type=jnp.float32)
                      + lin_b_ref[...])                               # (B, O)
            m = jnp.max(logits, axis=-1, keepdims=True)
            e = jnp.exp(logits - m)
            out_ref[...] = e / jnp.sum(e, axis=-1, keepdims=True)

    return kernel


# ---------------------------------------------------------------------------
# Wrapper: layout plumbing (time-major, batch padded to 8 sublanes) + pallas_call.
# ---------------------------------------------------------------------------
@jax.jit
def simple_lstm_forward(x, params):
    # x: (B, T, D) batch_first, like the PyTorch module.
    B, T, D = x.shape
    H = params["lstm"][0]["whh"].shape[0]
    O = params["lin_w"].shape[-1]
    num_layers = len(params["lstm"])

    B_pad = max(8, ((B + 7) // 8) * 8)                 # dense sublanes
    TT = 8 if T % 8 == 0 else T                        # time chunk (8-aligned or full T)
    n_chunks = T // TT

    # TODO(synk): fold this transpose/pad/reshape into the x BlockSpec to avoid an extra
    # HBM round trip of the input at scale.
    x_tm = jnp.transpose(x, (1, 0, 2))                 # (T, B, D) time-major
    x_tm = jnp.pad(x_tm, ((0, 0), (0, B_pad - B), (0, 0)))
    x2d = x_tm.reshape(T * B_pad, D)                   # rows [t*B : (t+1)*B] = step t

    args = [x2d]
    in_specs = [pl.BlockSpec((TT * B_pad, D), lambda c: (c, 0))]   # pipelined input DMA

    def resident_spec(a):                              # full array, fetched once
        nd = a.ndim
        return pl.BlockSpec(a.shape, lambda c, _nd=nd: (0,) * _nd)

    for layer in params["lstm"]:
        for w, to_bf16 in ((layer["wih"], True), (layer["whh"], True), (layer["b"], False)):
            w = w.astype(jnp.bfloat16) if to_bf16 else w
            args.append(w)
            in_specs.append(resident_spec(w))
    for w, to_bf16 in ((params["lin_w"], True), (params["lin_b"], False)):
        w = w.astype(jnp.bfloat16) if to_bf16 else w
        args.append(w)
        in_specs.append(resident_spec(w))

    kernel = make_fused_kernel(num_layers, TT, B_pad, H)
    out = pl.pallas_call(
        kernel,
        out_shape=jax.ShapeDtypeStruct((B_pad, O), jnp.float32),
        grid=(n_chunks,),
        in_specs=in_specs,
        out_specs=pl.BlockSpec((B_pad, O), lambda c: (0, 0)),
        scratch_shapes=[
            pltpu.VMEM((TT * B_pad, H), jnp.float32),          # hidden sequence (chunk)
            pltpu.VMEM((TT * B_pad, 4 * H), jnp.float32),      # hoisted x-projection
            pltpu.VMEM((num_layers, B_pad, H), jnp.float32),   # h state across chunks
            pltpu.VMEM((num_layers, B_pad, H), jnp.float32),   # c state across chunks
        ],
        compiler_params=pltpu.CompilerParams(
            dimension_semantics=("arbitrary",),                # serial recurrence axis
            vmem_limit_bytes=32 * 1024 * 1024,
        ),
    )(*args)
    return out[:B]


# ---------------------------------------------------------------------------
# Parameter init (mirrors PyTorch uniform(-1/sqrt(H), 1/sqrt(H)); fused gate layout
# (i, f, g, o) stacked along the last axis of (D_in, 4H) / (H, 4H)). Stored f32; the
# wrapper casts matmul weights to bf16 at the kernel boundary.
# ---------------------------------------------------------------------------
def init_params(key, in_features, hidden_size, num_layers, out_features):
    k = 1.0 / (hidden_size ** 0.5)
    params = {"lstm": []}
    for layer in range(num_layers):
        d_in = in_features if layer == 0 else hidden_size
        key, k1, k2, k3, k4 = jax.random.split(key, 5)
        wih = jax.random.uniform(k1, (d_in, 4 * hidden_size), jnp.float32, -k, k)
        whh = jax.random.uniform(k2, (hidden_size, 4 * hidden_size), jnp.float32, -k, k)
        b_ih = jax.random.uniform(k3, (1, 4 * hidden_size), jnp.float32, -k, k)
        b_hh = jax.random.uniform(k4, (1, 4 * hidden_size), jnp.float32, -k, k)
        params["lstm"].append({"wih": wih, "whh": whh, "b": b_ih + b_hh})
    key, k5, k6 = jax.random.split(key, 3)
    params["lin_w"] = jax.random.uniform(k5, (hidden_size, out_features), jnp.float32, -k, k)
    params["lin_b"] = jax.random.uniform(k6, (1, out_features), jnp.float32, -k, k)
    return params


# ---------------------------------------------------------------------------
# Pure-JAX f32 reference (same math, no Pallas) for a correctness cross-check.
# ---------------------------------------------------------------------------
def ref_forward(x, params):
    B, T, _ = x.shape
    h_seq = x
    for layer in params["lstm"]:
        H = layer["whh"].shape[0]
        h = jnp.zeros((B, H), jnp.float32)
        c = jnp.zeros((B, H), jnp.float32)
        outs = []
        for t in range(T):
            gates = h_seq[:, t] @ layer["wih"] + h @ layer["whh"] + layer["b"]
            i_g = jax.nn.sigmoid(gates[:, 0 * H:1 * H])
            f_g = jax.nn.sigmoid(gates[:, 1 * H:2 * H])
            g_g = jnp.tanh(gates[:, 2 * H:3 * H])
            o_g = jax.nn.sigmoid(gates[:, 3 * H:4 * H])
            c = f_g * c + i_g * g_g
            h = o_g * jnp.tanh(c)
            outs.append(h)
        h_seq = jnp.stack(outs, axis=1)
    logits = h_seq[:, -1] @ params["lin_w"] + params["lin_b"]
    return jax.nn.softmax(logits, axis=-1)


if __name__ == "__main__":
    B, T = 2, 16                      # T=16 exercises 2 time chunks (TT=8) + state carry
    in_features, hidden_size, num_layers, out_features = 4, 32, 2, 2

    key = jax.random.PRNGKey(0)
    key, xk = jax.random.split(key)
    x = jax.random.normal(xk, (B, T, in_features), jnp.float32)
    params = init_params(key, in_features, hidden_size, num_layers, out_features)

    out = simple_lstm_forward(x, params)
    out = jax.block_until_ready(out)

    assert out.shape == (B, out_features)
    # exact softmax normalization -> rows sum to 1 within f32 rounding
    assert bool(jnp.allclose(jnp.sum(out, axis=-1), 1.0, atol=1e-5))
    # cross-check against the pure-f32 reference (bf16 MXU operands -> loosened tolerance)
    ref = ref_forward(x, params)
    assert bool(jnp.allclose(out, ref, rtol=1e-2, atol=1e-2))
    print("KERNEL_OK")
</pallas_src>

<mosaic_0001>
module attributes {stable_mosaic.version = 11 : i64} {
  func.func @kernel(%arg0: i32, %arg1: memref<64x4xf32, #tpu.memory_space<vmem>>, %arg2: memref<4x128xbf16, #tpu.memory_space<vmem>>, %arg3: memref<32x128xbf16, #tpu.memory_space<vmem>>, %arg4: memref<1x128xf32, #tpu.memory_space<vmem>>, %arg5: memref<32x128xbf16, #tpu.memory_space<vmem>>, %arg6: memref<32x128xbf16, #tpu.memory_space<vmem>>, %arg7: memref<1x128xf32, #tpu.memory_space<vmem>>, %arg8: memref<32x2xbf16, #tpu.memory_space<vmem>>, %arg9: memref<1x2xf32, #tpu.memory_space<vmem>>, %arg10: memref<8x2xf32, #tpu.memory_space<vmem>>, %arg11: memref<64x32xf32, #tpu.memory_space<vmem>>, %arg12: memref<64x128xf32, #tpu.memory_space<vmem>>, %arg13: memref<2x8x32xf32, #tpu.memory_space<vmem>>, %arg14: memref<2x8x32xf32, #tpu.memory_space<vmem>>) attributes {dimension_semantics = [#tpu.dimension_semantics<arbitrary>], iteration_bounds = array<i64: 2>, scalar_prefetch = 0 : i64, scratch_operands = 4 : i64, tpu.core_type = #tpu.core_type<tc>, window_params = [{transform_indices = @transform_0, window_bounds = array<i64: 64, 4>}, {pipeline_mode = #tpu.pipeline_mode<synchronous>, transform_indices = @transform_1, window_bounds = array<i64: 4, 128>}, {pipeline_mode = #tpu.pipeline_mode<synchronous>, transform_indices = @transform_2, window_bounds = array<i64: 32, 128>}, {pipeline_mode = #tpu.pipeline_mode<synchronous>, transform_indices = @transform_3, window_bounds = array<i64: 1, 128>}, {pipeline_mode = #tpu.pipeline_mode<synchronous>, transform_indices = @transform_4, window_bounds = array<i64: 32, 128>}, {pipeline_mode = #tpu.pipeline_mode<synchronous>, transform_indices = @transform_5, window_bounds = array<i64: 32, 128>}, {pipeline_mode = #tpu.pipeline_mode<synchronous>, transform_indices = @transform_6, window_bounds = array<i64: 1, 128>}, {pipeline_mode = #tpu.pipeline_mode<synchronous>, transform_indices = @transform_7, window_bounds = array<i64: 32, 2>}, {pipeline_mode = #tpu.pipeline_mode<synchronous>, transform_indices = @transform_8, window_bounds = array<i64: 1, 2>}, {pipeline_mode = #tpu.pipeline_mode<synchronous>, transform_indices = @transform_9, window_bounds = array<i64: 8, 2>}]} {
    %c0_i32 = arith.constant 0 : i32
    %0 = arith.cmpi eq, %arg0, %c0_i32 : i32
    %1 = arith.extui %0 : i1 to i32
    %c0_i32_0 = arith.constant 0 : i32
    %2 = arith.cmpi ne, %1, %c0_i32_0 : i32
    scf.if %2 {
      %cst_128 = arith.constant 0.000000e+00 : f32
      %434 = vector.broadcast %cst_128 : f32 to vector<2x8x32xf32>
      %c0_129 = arith.constant 0 : index
      %c0_130 = arith.constant 0 : index
      %c0_131 = arith.constant 0 : index
      %435 = vector.load %arg13[%c0_129, %c0_130, %c0_131] : memref<2x8x32xf32, #tpu.memory_space<vmem>>, vector<2x8x32xf32>
      tpu.vector_store %arg13[%c0_129, %c0_130, %c0_131], %434 {strides = array<i32>} : memref<2x8x32xf32, #tpu.memory_space<vmem>>, vector<2x8x32xf32>,
      %cst_132 = arith.constant 0.000000e+00 : f32
      %436 = vector.broadcast %cst_132 : f32 to vector<2x8x32xf32>
      %c0_133 = arith.constant 0 : index
      %c0_134 = arith.constant 0 : index
      %c0_135 = arith.constant 0 : index
      %437 = vector.load %arg14[%c0_133, %c0_134, %c0_135] : memref<2x8x32xf32, #tpu.memory_space<vmem>>, vector<2x8x32xf32>
      tpu.vector_store %arg14[%c0_133, %c0_134, %c0_135], %436 {strides = array<i32>} : memref<2x8x32xf32, #tpu.memory_space<vmem>>, vector<2x8x32xf32>,
    } else {
    }
    %3 = tpu.iota {dimensions = array<i32: 1>} : vector<8x128xi32>
    %c64_i32 = arith.constant 64 : i32
    %4 = vector.broadcast %c64_i32 : i32 to vector<8x128xi32>
    %5 = arith.cmpi sge, %3, %4 : vector<8x128xi32>
    %c96_i32 = arith.constant 96 : i32
    %6 = vector.broadcast %c96_i32 : i32 to vector<8x128xi32>
    %7 = arith.cmpi slt, %3, %6 : vector<8x128xi32>
    %8 = arith.andi %5, %7 : vector<8x128xi1>
    %c0 = arith.constant 0 : index
    %c0_1 = arith.constant 0 : index
    %9 = vector.load %arg1[%c0, %c0_1] : memref<64x4xf32, #tpu.memory_space<vmem>>, vector<64x4xf32>
    %10 = arith.truncf %9 : vector<64x4xf32> to vector<64x4xbf16>
    %c0_2 = arith.constant 0 : index
    %c0_3 = arith.constant 0 : index
    %11 = vector.load %arg2[%c0_2, %c0_3] : memref<4x128xbf16, #tpu.memory_space<vmem>>, vector<4x128xbf16>
    %cst = arith.constant dense<0.000000e+00> : vector<64x128xf32>
    %12 = tpu.matmul %10, %11, %cst {dimension_numbers = #tpu.dot_dimension_numbers<[1], [0], [0], [1], [0, 0, 1, 1], [], []>} : vector<64x4xbf16>, vector<4x128xbf16>, vector<64x128xf32> -> vector<64x128xf32>
    %c0_4 = arith.constant 0 : index
    %c0_5 = arith.constant 0 : index
    %13 = vector.load %arg4[%c0_4, %c0_5] : memref<1x128xf32, #tpu.memory_space<vmem>>, vector<1x128xf32>
    %14 = vector.broadcast %13 : vector<1x128xf32> to vector<64x128xf32>
    %15 = arith.addf %12, %14 : vector<64x128xf32>
    %c0_6 = arith.constant 0 : index
    %c0_7 = arith.constant 0 : index
    %16 = vector.load %arg12[%c0_6, %c0_7] : memref<64x128xf32, #tpu.memory_space<vmem>>, vector<64x128xf32>
    tpu.vector_store %arg12[%c0_6, %c0_7], %15 {strides = array<i32>} : memref<64x128xf32, #tpu.memory_space<vmem>>, vector<64x128xf32>,
    %c0_8 = arith.constant 0 : index
    %c0_9 = arith.constant 0 : index
    %17 = vector.load %arg3[%c0_8, %c0_9] : memref<32x128xbf16, #tpu.memory_space<vmem>>, vector<32x128xbf16>
    %c0_10 = arith.constant 0 : index
    %c0_11 = arith.constant 0 : index
    %c0_12 = arith.constant 0 : index
    %18 = vector.load %arg13[%c0_10, %c0_11, %c0_12] : memref<2x8x32xf32, #tpu.memory_space<vmem>>, vector<1x8x32xf32>
    %19 = vector.shape_cast %18 : vector<1x8x32xf32> to vector<8x32xf32>
    %c0_13 = arith.constant 0 : index
    %c0_14 = arith.constant 0 : index
    %c0_15 = arith.constant 0 : index
    %20 = vector.load %arg14[%c0_13, %c0_14, %c0_15] : memref<2x8x32xf32, #tpu.memory_space<vmem>>, vector<1x8x32xf32>
    %21 = vector.shape_cast %20 : vector<1x8x32xf32> to vector<8x32xf32>
    %c0_i32_16 = arith.constant 0 : i32
    %c8_i32 = arith.constant 8 : i32
    %22 = arith.muli %c0_i32_16, %c8_i32 : i32
    %23 = tpu.assume_multiple %22, 8 : i32
    %24 = arith.index_cast %23 : i32 to index
    %c0_17 = arith.constant 0 : index
    %25 = vector.load %arg12[%24, %c0_17] : memref<64x128xf32, #tpu.memory_space<vmem>>, vector<8x128xf32>
    %26 = arith.truncf %19 : vector<8x32xf32> to vector<8x32xbf16>
    %cst_18 = arith.constant dense<0.000000e+00> : vector<8x128xf32>
    %27 = tpu.matmul %26, %17, %cst_18 {dimension_numbers = #tpu.dot_dimension_numbers<[1], [0], [0], [1], [0, 0, 1, 1], [], []>} : vector<8x32xbf16>, vector<32x128xbf16>, vector<8x128xf32> -> vector<8x128xf32>
    %28 = arith.addf %25, %27 : vector<8x128xf32>
    %29 = math.tanh %28 : vector<8x128xf32>
    %30 = arith.negf %28 : vector<8x128xf32>
    %31 = math.exp %30 : vector<8x128xf32>
    %cst_19 = arith.constant 1.000000e+00 : f32
    %32 = vector.broadcast %cst_19 : f32 to vector<8x128xf32>
    %33 = arith.addf %32, %31 : vector<8x128xf32>
    %34 = arith.divf %32, %33 : vector<8x128xf32>
    %35 = arith.select %8, %29, %34 : vector<8x128xi1>, vector<8x128xf32>
    %36 = vector.extract_strided_slice %35 {offsets = [0, 0], sizes = [8, 32], strides = [1, 1]} : vector<8x128xf32> to vector<8x32xf32>
    %37 = vector.extract_strided_slice %35 {offsets = [0, 32], sizes = [8, 32], strides = [1, 1]} : vector<8x128xf32> to vector<8x32xf32>
    %38 = vector.extract_strided_slice %35 {offsets = [0, 64], sizes = [8, 32], strides = [1, 1]} : vector<8x128xf32> to vector<8x32xf32>
    %39 = vector.extract_strided_slice %35 {offsets = [0, 96], sizes = [8, 32], strides = [1, 1]} : vector<8x128xf32> to vector<8x32xf32>
    %40 = arith.mulf %37, %21 : vector<8x32xf32>
    %41 = arith.mulf %36, %38 : vector<8x32xf32>
    %42 = arith.addf %40, %41 : vector<8x32xf32>
    %43 = math.tanh %42 : vector<8x32xf32>
    %44 = arith.mulf %39, %43 : vector<8x32xf32>
    %45 = arith.index_cast %23 : i32 to index
    %c0_20 = arith.constant 0 : index
    %46 = vector.load %arg11[%45, %c0_20] : memref<64x32xf32, #tpu.memory_space<vmem>>, vector<8x32xf32>
    tpu.vector_store %arg11[%45, %c0_20], %44 {strides = array<i32>} : memref<64x32xf32, #tpu.memory_space<vmem>>, vector<8x32xf32>,
    %c1_i32 = arith.constant 1 : i32
    %c8_i32_21 = arith.constant 8 : i32
    %47 = arith.muli %c1_i32, %c8_i32_21 : i32
    %48 = tpu.assume_multiple %47, 8 : i32
    %49 = arith.index_cast %48 : i32 to index
    %c0_22 = arith.constant 0 : index
    %50 = vector.load %arg12[%49, %c0_22] : memref<64x128xf32, #tpu.memory_space<vmem>>, vector<8x128xf32>
    %51 = arith.truncf %44 : vector<8x32xf32> to vector<8x32xbf16>
    %cst_23 = arith.constant dense<0.000000e+00> : vector<8x128xf32>
    %52 = tpu.matmul %51, %17, %cst_23 {dimension_numbers = #tpu.dot_dimension_numbers<[1], [0], [0], [1], [0, 0, 1, 1], [], []>} : vector<8x32xbf16>, vector<32x128xbf16>, vector<8x128xf32> -> vector<8x128xf32>
    %53 = arith.addf %50, %52 : vector<8x128xf32>
    %54 = math.tanh %53 : vector<8x128xf32>
    %55 = arith.negf %53 : vector<8x128xf32>
    %56 = math.exp %55 : vector<8x128xf32>
    %cst_24 = arith.constant 1.000000e+00 : f32
    %57 = vector.broadcast %cst_24 : f32 to vector<8x128xf32>
    %58 = arith.addf %57, %56 : vector<8x128xf32>
    %59 = arith.divf %57, %58 : vector<8x128xf32>
    %60 = arith.select %8, %54, %59 : vector<8x128xi1>, vector<8x128xf32>
    %61 = vector.extract_strided_slice %60 {offsets = [0, 0], sizes = [8, 32], strides = [1, 1]} : vector<8x128xf32> to vector<8x32xf32>
    %62 = vector.extract_strided_slice %60 {offsets = [0, 32], sizes = [8, 32], strides = [1, 1]} : vector<8x128xf32> to vector<8x32xf32>
    %63 = vector.extract_strided_slice %60 {offsets = [0, 64], sizes = [8, 32], strides = [1, 1]} : vector<8x128xf32> to vector<8x32xf32>
    %64 = vector.extract_strided_slice %60 {offsets = [0, 96], sizes = [8, 32], strides = [1, 1]} : vector<8x128xf32> to vector<8x32xf32>
    %65 = arith.mulf %62, %42 : vector<8x32xf32>
    %66 = arith.mulf %61, %63 : vector<8x32xf32>
    %67 = arith.addf %65, %66 : vector<8x32xf32>
    %68 = math.tanh %67 : vector<8x32xf32>
    %69 = arith.mulf %64, %68 : vector<8x32xf32>
    %70 = arith.index_cast %48 : i32 to index
    %c0_25 = arith.constant 0 : index
    %71 = vector.load %arg11[%70, %c0_25] : memref<64x32xf32, #tpu.memory_space<vmem>>, vector<8x32xf32>
    tpu.vector_store %arg11[%70, %c0_25], %69 {strides = array<i32>} : memref<64x32xf32, #tpu.memory_space<vmem>>, vector<8x32xf32>,
    %c2_i32 = arith.constant 2 : i32
    %c8_i32_26 = arith.constant 8 : i32
    %72 = arith.muli %c2_i32, %c8_i32_26 : i32
    %73 = tpu.assume_multiple %72, 8 : i32
    %74 = arith.index_cast %73 : i32 to index
    %c0_27 = arith.constant 0 : index
    %75 = vector.load %arg12[%74, %c0_27] : memref<64x128xf32, #tpu.memory_space<vmem>>, vector<8x128xf32>
    %76 = arith.truncf %69 : vector<8x32xf32> to vector<8x32xbf16>
    %cst_28 = arith.constant dense<0.000000e+00> : vector<8x128xf32>
    %77 = tpu.matmul %76, %17, %cst_28 {dimension_numbers = #tpu.dot_dimension_numbers<[1], [0], [0], [1], [0, 0, 1, 1], [], []>} : vector<8x32xbf16>, vector<32x128xbf16>, vector<8x128xf32> -> vector<8x128xf32>
    %78 = arith.addf %75, %77 : vector<8x128xf32>
    %79 = math.tanh %78 : vector<8x128xf32>
    %80 = arith.negf %78 : vector<8x128xf32>
    %81 = math.exp %80 : vector<8x128xf32>
    %cst_29 = arith.constant 1.000000e+00 : f32
    %82 = vector.broadcast %cst_29 : f32 to vector<8x128xf32>
    %83 = arith.addf %82, %81 : vector<8x128xf32>
    %84 = arith.divf %82, %83 : vector<8x128xf32>
    %85 = arith.select %8, %79, %84 : vector<8x128xi1>, vector<8x128xf32>
    %86 = vector.extract_strided_slice %85 {offsets = [0, 0], sizes = [8, 32], strides = [1, 1]} : vector<8x128xf32> to vector<8x32xf32>
    %87 = vector.extract_strided_slice %85 {offsets = [0, 32], sizes = [8, 32], strides = [1, 1]} : vector<8x128xf32> to vector<8x32xf32>
    %88 = vector.extract_strided_slice %85 {offsets = [0, 64], sizes = [8, 32], strides = [1, 1]} : vector<8x128xf32> to vector<8x32xf32>
    %89 = vector.extract_strided_slice %85 {offsets = [0, 96], sizes = [8, 32], strides = [1, 1]} : vector<8x128xf32> to vector<8x32xf32>
    %90 = arith.mulf %87, %67 : vector<8x32xf32>
    %91 = arith.mulf %86, %88 : vector<8x32xf32>
    %92 = arith.addf %90, %91 : vector<8x32xf32>
    %93 = math.tanh %92 : vector<8x32xf32>
    %94 = arith.mulf %89, %93 : vector<8x32xf32>
    %95 = arith.index_cast %73 : i32 to index
    %c0_30 = arith.constant 0 : index
    %96 = vector.load %arg11[%95, %c0_30] : memref<64x32xf32, #tpu.memory_space<vmem>>, vector<8x32xf32>
    tpu.vector_store %arg11[%95, %c0_30], %94 {strides = array<i32>} : memref<64x32xf32, #tpu.memory_space<vmem>>, vector<8x32xf32>,
    %c3_i32 = arith.constant 3 : i32
    %c8_i32_31 = arith.constant 8 : i32
    %97 = arith.muli %c3_i32, %c8_i32_31 : i32
    %98 = tpu.assume_multiple %97, 8 : i32
    %99 = arith.index_cast %98 : i32 to index
    %c0_32 = arith.constant 0 : index
    %100 = vector.load %arg12[%99, %c0_32] : memref<64x128xf32, #tpu.memory_space<vmem>>, vector<8x128xf32>
    %101 = arith.truncf %94 : vector<8x32xf32> to vector<8x32xbf16>
    %cst_33 = arith.constant dense<0.000000e+00> : vector<8x128xf32>
    %102 = tpu.matmul %101, %17, %cst_33 {dimension_numbers = #tpu.dot_dimension_numbers<[1], [0], [0], [1], [0, 0, 1, 1], [], []>} : vector<8x32xbf16>, vector<32x128xbf16>, vector<8x128xf32> -> vector<8x128xf32>
    %103 = arith.addf %100, %102 : vector<8x128xf32>
    %104 = math.tanh %103 : vector<8x128xf32>
    %105 = arith.negf %103 : vector<8x128xf32>
    %106 = math.exp %105 : vector<8x128xf32>
    %cst_34 = arith.constant 1.000000e+00 : f32
    %107 = vector.broadcast %cst_34 : f32 to vector<8x128xf32>
    %108 = arith.addf %107, %106 : vector<8x128xf32>
    %109 = arith.divf %107, %108 : vector<8x128xf32>
    %110 = arith.select %8, %104, %109 : vector<8x128xi1>, vector<8x128xf32>
    %111 = vector.extract_strided_slice %110 {offsets = [0, 0], sizes = [8, 32], strides = [1, 1]} : vector<8x128xf32> to vector<8x32xf32>
    %112 = vector.extract_strided_slice %110 {offsets = [0, 32], sizes = [8, 32], strides = [1, 1]} : vector<8x128xf32> to vector<8x32xf32>
    %113 = vector.extract_strided_slice %110 {offsets = [0, 64], sizes = [8, 32], strides = [1, 1]} : vector<8x128xf32> to vector<8x32xf32>
    %114 = vector.extract_strided_slice %110 {offsets = [0, 96], sizes = [8, 32], strides = [1, 1]} : vector<8x128xf32> to vector<8x32xf32>
    %115 = arith.mulf %112, %92 : vector<8x32xf32>
    %116 = arith.mulf %111, %113 : vector<8x32xf32>
    %117 = arith.addf %115, %116 : vector<8x32xf32>
    %118 = math.tanh %117 : vector<8x32xf32>
    %119 = arith.mulf %114, %118 : vector<8x32xf32>
    %120 = arith.index_cast %98 : i32 to index
    %c0_35 = arith.constant 0 : index
    %121 = vector.load %arg11[%120, %c0_35] : memref<64x32xf32, #tpu.memory_space<vmem>>, vector<8x32xf32>
    tpu.vector_store %arg11[%120, %c0_35], %119 {strides = array<i32>} : memref<64x32xf32, #tpu.memory_space<vmem>>, vector<8x32xf32>,
    %c4_i32 = arith.constant 4 : i32
    %c8_i32_36 = arith.constant 8 : i32
    %122 = arith.muli %c4_i32, %c8_i32_36 : i32
    %123 = tpu.assume_multiple %122, 8 : i32
    %124 = arith.index_cast %123 : i32 to index
    %c0_37 = arith.constant 0 : index
    %125 = vector.load %arg12[%124, %c0_37] : memref<64x128xf32, #tpu.memory_space<vmem>>, vector<8x128xf32>
    %126 = arith.truncf %119 : vector<8x32xf32> to vector<8x32xbf16>
    %cst_38 = arith.constant dense<0.000000e+00> : vector<8x128xf32>
    %127 = tpu.matmul %126, %17, %cst_38 {dimension_numbers = #tpu.dot_dimension_numbers<[1], [0], [0], [1], [0, 0, 1, 1], [], []>} : vector<8x32xbf16>, vector<32x128xbf16>, vector<8x128xf32> -> vector<8x128xf32>
    %128 = arith.addf %125, %127 : vector<8x128xf32>
    %129 = math.tanh %128 : vector<8x128xf32>
    %130 = arith.negf %128 : vector<8x128xf32>
    %131 = math.exp %130 : vector<8x128xf32>
    %cst_39 = arith.constant 1.000000e+00 : f32
    %132 = vector.broadcast %cst_39 : f32 to vector<8x128xf32>
    %133 = arith.addf %132, %131 : vector<8x128xf32>
    %134 = arith.divf %132, %133 : vector<8x128xf32>
    %135 = arith.select %8, %129, %134 : vector<8x128xi1>, vector<8x128xf32>
    %136 = vector.extract_strided_slice %135 {offsets = [0, 0], sizes = [8, 32], strides = [1, 1]} : vector<8x128xf32> to vector<8x32xf32>
    %137 = vector.extract_strided_slice %135 {offsets = [0, 32], sizes = [8, 32], strides = [1, 1]} : vector<8x128xf32> to vector<8x32xf32>
    %138 = vector.extract_strided_slice %135 {offsets = [0, 64], sizes = [8, 32], strides = [1, 1]} : vector<8x128xf32> to vector<8x32xf32>
    %139 = vector.extract_strided_slice %135 {offsets = [0, 96], sizes = [8, 32], strides = [1, 1]} : vector<8x128xf32> to vector<8x32xf32>
    %140 = arith.mulf %137, %117 : vector<8x32xf32>
    %141 = arith.mulf %136, %138 : vector<8x32xf32>
    %142 = arith.addf %140, %141 : vector<8x32xf32>
    %143 = math.tanh %142 : vector<8x32xf32>
    %144 = arith.mulf %139, %143 : vector<8x32xf32>
    %145 = arith.index_cast %123 : i32 to index
    %c0_40 = arith.constant 0 : index
    %146 = vector.load %arg11[%145, %c0_40] : memref<64x32xf32, #tpu.memory_space<vmem>>, vector<8x32xf32>
    tpu.vector_store %arg11[%145, %c0_40], %144 {strides = array<i32>} : memref<64x32xf32, #tpu.memory_space<vmem>>, vector<8x32xf32>,
    %c5_i32 = arith.constant 5 : i32
    %c8_i32_41 = arith.constant 8 : i32
    %147 = arith.muli %c5_i32, %c8_i32_41 : i32
    %148 = tpu.assume_multiple %147, 8 : i32
    %149 = arith.index_cast %148 : i32 to index
    %c0_42 = arith.constant 0 : index
    %150 = vector.load %arg12[%149, %c0_42] : memref<64x128xf32, #tpu.memory_space<vmem>>, vector<8x128xf32>
    %151 = arith.truncf %144 : vector<8x32xf32> to vector<8x32xbf16>
    %cst_43 = arith.constant dense<0.000000e+00> : vector<8x128xf32>
    %152 = tpu.matmul %151, %17, %cst_43 {dimension_numbers = #tpu.dot_dimension_numbers<[1], [0], [0], [1], [0, 0, 1, 1], [], []>} : vector<8x32xbf16>, vector<32x128xbf16>, vector<8x128xf32> -> vector<8x128xf32>
    %153 = arith.addf %150, %152 : vector<8x128xf32>
    %154 = math.tanh %153 : vector<8x128xf32>
    %155 = arith.negf %153 : vector<8x128xf32>
    %156 = math.exp %155 : vector<8x128xf32>
    %cst_44 = arith.constant 1.000000e+00 : f32
    %157 = vector.broadcast %cst_44 : f32 to vector<8x128xf32>
    %158 = arith.addf %157, %156 : vector<8x128xf32>
    %159 = arith.divf %157, %158 : vector<8x128xf32>
    %160 = arith.select %8, %154, %159 : vector<8x128xi1>, vector<8x128xf32>
    %161 = vector.extract_strided_slice %160 {offsets = [0, 0], sizes = [8, 32], strides = [1, 1]} : vector<8x128xf32> to vector<8x32xf32>
    %162 = vector.extract_strided_slice %160 {offsets = [0, 32], sizes = [8, 32], strides = [1, 1]} : vector<8x128xf32> to vector<8x32xf32>
    %163 = vector.extract_strided_slice %160 {offsets = [0, 64], sizes = [8, 32], strides = [1, 1]} : vector<8x128xf32> to vector<8x32xf32>
    %164 = vector.extract_strided_slice %160 {offsets = [0, 96], sizes = [8, 32], strides = [1, 1]} : vector<8x128xf32> to vector<8x32xf32>
    %165 = arith.mulf %162, %142 : vector<8x32xf32>
    %166 = arith.mulf %161, %163 : vector<8x32xf32>
    %167 = arith.addf %165, %166 : vector<8x32xf32>
    %168 = math.tanh %167 : vector<8x32xf32>
    %169 = arith.mulf %164, %168 : vector<8x32xf32>
    %170 = arith.index_cast %148 : i32 to index
    %c0_45 = arith.constant 0 : index
    %171 = vector.load %arg11[%170, %c0_45] : memref<64x32xf32, #tpu.memory_space<vmem>>, vector<8x32xf32>
    tpu.vector_store %arg11[%170, %c0_45], %169 {strides = array<i32>} : memref<64x32xf32, #tpu.memory_space<vmem>>, vector<8x32xf32>,
    %c6_i32 = arith.constant 6 : i32
    %c8_i32_46 = arith.constant 8 : i32
    %172 = arith.muli %c6_i32, %c8_i32_46 : i32
    %173 = tpu.assume_multiple %172, 8 : i32
    %174 = arith.index_cast %173 : i32 to index
    %c0_47 = arith.constant 0 : index
    %175 = vector.load %arg12[%174, %c0_47] : memref<64x128xf32, #tpu.memory_space<vmem>>, vector<8x128xf32>
    %176 = arith.truncf %169 : vector<8x32xf32> to vector<8x32xbf16>
    %cst_48 = arith.constant dense<0.000000e+00> : vector<8x128xf32>
    %177 = tpu.matmul %176, %17, %cst_48 {dimension_numbers = #tpu.dot_dimension_numbers<[1], [0], [0], [1], [0, 0, 1, 1], [], []>} : vector<8x32xbf16>, vector<32x128xbf16>, vector<8x128xf32> -> vector<8x128xf32>
    %178 = arith.addf %175, %177 : vector<8x128xf32>
    %179 = math.tanh %178 : vector<8x128xf32>
    %180 = arith.negf %178 : vector<8x128xf32>
    %181 = math.exp %180 : vector<8x128xf32>
    %cst_49 = arith.constant 1.000000e+00 : f32
    %182 = vector.broadcast %cst_49 : f32 to vector<8x128xf32>
    %183 = arith.addf %182, %181 : vector<8x128xf32>
    %184 = arith.divf %182, %183 : vector<8x128xf32>
    %185 = arith.select %8, %179, %184 : vector<8x128xi1>, vector<8x128xf32>
    %186 = vector.extract_strided_slice %185 {offsets = [0, 0], sizes = [8, 32], strides = [1, 1]} : vector<8x128xf32> to vector<8x32xf32>
    %187 = vector.extract_strided_slice %185 {offsets = [0, 32], sizes = [8, 32], strides = [1, 1]} : vector<8x128xf32> to vector<8x32xf32>
    %188 = vector.extract_strided_slice %185 {offsets = [0, 64], sizes = [8, 32], strides = [1, 1]} : vector<8x128xf32> to vector<8x32xf32>
    %189 = vector.extract_strided_slice %185 {offsets = [0, 96], sizes = [8, 32], strides = [1, 1]} : vector<8x128xf32> to vector<8x32xf32>
    %190 = arith.mulf %187, %167 : vector<8x32xf32>
    %191 = arith.mulf %186, %188 : vector<8x32xf32>
    %192 = arith.addf %190, %191 : vector<8x32xf32>
    %193 = math.tanh %192 : vector<8x32xf32>
    %194 = arith.mulf %189, %193 : vector<8x32xf32>
    %195 = arith.index_cast %173 : i32 to index
    %c0_50 = arith.constant 0 : index
    %196 = vector.load %arg11[%195, %c0_50] : memref<64x32xf32, #tpu.memory_space<vmem>>, vector<8x32xf32>
    tpu.vector_store %arg11[%195, %c0_50], %194 {strides = array<i32>} : memref<64x32xf32, #tpu.memory_space<vmem>>, vector<8x32xf32>,
    %c7_i32 = arith.constant 7 : i32
    %c8_i32_51 = arith.constant 8 : i32
    %197 = arith.muli %c7_i32, %c8_i32_51 : i32
    %198 = tpu.assume_multiple %197, 8 : i32
    %199 = arith.index_cast %198 : i32 to index
    %c0_52 = arith.constant 0 : index
    %200 = vector.load %arg12[%199, %c0_52] : memref<64x128xf32, #tpu.memory_space<vmem>>, vector<8x128xf32>
    %201 = arith.truncf %194 : vector<8x32xf32> to vector<8x32xbf16>
    %cst_53 = arith.constant dense<0.000000e+00> : vector<8x128xf32>
    %202 = tpu.matmul %201, %17, %cst_53 {dimension_numbers = #tpu.dot_dimension_numbers<[1], [0], [0], [1], [0, 0, 1, 1], [], []>} : vector<8x32xbf16>, vector<32x128xbf16>, vector<8x128xf32> -> vector<8x128xf32>
    %203 = arith.addf %200, %202 : vector<8x128xf32>
    %204 = math.tanh %203 : vector<8x128xf32>
    %205 = arith.negf %203 : vector<8x128xf32>
    %206 = math.exp %205 : vector<8x128xf32>
    %cst_54 = arith.constant 1.000000e+00 : f32
    %207 = vector.broadcast %cst_54 : f32 to vector<8x128xf32>
    %208 = arith.addf %207, %206 : vector<8x128xf32>
    %209 = arith.divf %207, %208 : vector<8x128xf32>
    %210 = arith.select %8, %204, %209 : vector<8x128xi1>, vector<8x128xf32>
    %211 = vector.extract_strided_slice %210 {offsets = [0, 0], sizes = [8, 32], strides = [1, 1]} : vector<8x128xf32> to vector<8x32xf32>
    %212 = vector.extract_strided_slice %210 {offsets = [0, 32], sizes = [8, 32], strides = [1, 1]} : vector<8x128xf32> to vector<8x32xf32>
    %213 = vector.extract_strided_slice %210 {offsets = [0, 64], sizes = [8, 32], strides = [1, 1]} : vector<8x128xf32> to vector<8x32xf32>
    %214 = vector.extract_strided_slice %210 {offsets = [0, 96], sizes = [8, 32], strides = [1, 1]} : vector<8x128xf32> to vector<8x32xf32>
    %215 = arith.mulf %212, %192 : vector<8x32xf32>
    %216 = arith.mulf %211, %213 : vector<8x32xf32>
    %217 = arith.addf %215, %216 : vector<8x32xf32>
    %218 = math.tanh %217 : vector<8x32xf32>
    %219 = arith.mulf %214, %218 : vector<8x32xf32>
    %220 = arith.index_cast %198 : i32 to index
    %c0_55 = arith.constant 0 : index
    %221 = vector.load %arg11[%220, %c0_55] : memref<64x32xf32, #tpu.memory_space<vmem>>, vector<8x32xf32>
    tpu.vector_store %arg11[%220, %c0_55], %219 {strides = array<i32>} : memref<64x32xf32, #tpu.memory_space<vmem>>, vector<8x32xf32>,
    %c8_i32_56 = arith.constant 8 : i32
    %c0_57 = arith.constant 0 : index
    %c0_58 = arith.constant 0 : index
    %c0_59 = arith.constant 0 : index
    %222 = vector.load %arg13[%c0_57, %c0_58, %c0_59] : memref<2x8x32xf32, #tpu.memory_space<vmem>>, vector<1x8x32xf32>
    %223 = vector.shape_cast %222 : vector<1x8x32xf32> to vector<8x32xf32>
    %224 = vector.shape_cast %219 : vector<8x32xf32> to vector<1x8x32xf32>
    tpu.vector_store %arg13[%c0_57, %c0_58, %c0_59], %224 {strides = array<i32>} : memref<2x8x32xf32, #tpu.memory_space<vmem>>, vector<1x8x32xf32>,
    %c0_60 = arith.constant 0 : index
    %c0_61 = arith.constant 0 : index
    %c0_62 = arith.constant 0 : index
    %225 = vector.load %arg14[%c0_60, %c0_61, %c0_62] : memref<2x8x32xf32, #tpu.memory_space<vmem>>, vector<1x8x32xf32>
    %226 = vector.shape_cast %225 : vector<1x8x32xf32> to vector<8x32xf32>
    %227 = vector.shape_cast %217 : vector<8x32xf32> to vector<1x8x32xf32>
    tpu.vector_store %arg14[%c0_60, %c0_61, %c0_62], %227 {strides = array<i32>} : memref<2x8x32xf32, #tpu.memory_space<vmem>>, vector<1x8x32xf32>,
    %c0_63 = arith.constant 0 : index
    %c0_64 = arith.constant 0 : index
    %228 = vector.load %arg11[%c0_63, %c0_64] : memref<64x32xf32, #tpu.memory_space<vmem>>, vector<64x32xf32>
    %229 = arith.truncf %228 : vector<64x32xf32> to vector<64x32xbf16>
    %c0_65 = arith.constant 0 : index
    %c0_66 = arith.constant 0 : index
    %230 = vector.load %arg5[%c0_65, %c0_66] : memref<32x128xbf16, #tpu.memory_space<vmem>>, vector<32x128xbf16>
    %cst_67 = arith.constant dense<0.000000e+00> : vector<64x128xf32>
    %231 = tpu.matmul %229, %230, %cst_67 {dimension_numbers = #tpu.dot_dimension_numbers<[1], [0], [0], [1], [0, 0, 1, 1], [], []>} : vector<64x32xbf16>, vector<32x128xbf16>, vector<64x128xf32> -> vector<64x128xf32>
    %c0_68 = arith.constant 0 : index
    %c0_69 = arith.constant 0 : index
    %232 = vector.load %arg7[%c0_68, %c0_69] : memref<1x128xf32, #tpu.memory_space<vmem>>, vector<1x128xf32>
    %233 = vector.broadcast %232 : vector<1x128xf32> to vector<64x128xf32>
    %234 = arith.addf %231, %233 : vector<64x128xf32>
    %c0_70 = arith.constant 0 : index
    %c0_71 = arith.constant 0 : index
    %235 = vector.load %arg12[%c0_70, %c0_71] : memref<64x128xf32, #tpu.memory_space<vmem>>, vector<64x128xf32>
    tpu.vector_store %arg12[%c0_70, %c0_71], %234 {strides = array<i32>} : memref<64x128xf32, #tpu.memory_space<vmem>>, vector<64x128xf32>,
    %c0_72 = arith.constant 0 : index
    %c0_73 = arith.constant 0 : index
    %236 = vector.load %arg6[%c0_72, %c0_73] : memref<32x128xbf16, #tpu.memory_space<vmem>>, vector<32x128xbf16>
    %c1 = arith.constant 1 : index
    %c0_74 = arith.constant 0 : index
    %c0_75 = arith.constant 0 : index
    %237 = vector.load %arg13[%c1, %c0_74, %c0_75] : memref<2x8x32xf32, #tpu.memory_space<vmem>>, vector<1x8x32xf32>
    %238 = vector.shape_cast %237 : vector<1x8x32xf32> to vector<8x32xf32>
    %c1_76 = arith.constant 1 : index
    %c0_77 = arith.constant 0 : index
    %c0_78 = arith.constant 0 : index
    %239 = vector.load %arg14[%c1_76, %c0_77, %c0_78] : memref<2x8x32xf32, #tpu.memory_space<vmem>>, vector<1x8x32xf32>
    %240 = vector.shape_cast %239 : vector<1x8x32xf32> to vector<8x32xf32>
    %c0_i32_79 = arith.constant 0 : i32
    %c8_i32_80 = arith.constant 8 : i32
    %241 = arith.muli %c0_i32_79, %c8_i32_80 : i32
    %242 = tpu.assume_multiple %241, 8 : i32
    %243 = arith.index_cast %242 : i32 to index
    %c0_81 = arith.constant 0 : index
    %244 = vector.load %arg12[%243, %c0_81] : memref<64x128xf32, #tpu.memory_space<vmem>>, vector<8x128xf32>
    %245 = arith.truncf %238 : vector<8x32xf32> to vector<8x32xbf16>
    %cst_82 = arith.constant dense<0.000000e+00> : vector<8x128xf32>
    %246 = tpu.matmul %245, %236, %cst_82 {dimension_numbers = #tpu.dot_dimension_numbers<[1], [0], [0], [1], [0, 0, 1, 1], [], []>} : vector<8x32xbf16>, vector<32x128xbf16>, vector<8x128xf32> -> vector<8x128xf32>
    %247 = arith.addf %244, %246 : vector<8x128xf32>
    %248 = math.tanh %247 : vector<8x128xf32>
    %249 = arith.negf %247 : vector<8x128xf32>
    %250 = math.exp %249 : vector<8x128xf32>
    %cst_83 = arith.constant 1.000000e+00 : f32
    %251 = vector.broadcast %cst_83 : f32 to vector<8x128xf32>
    %252 = arith.addf %251, %250 : vector<8x128xf32>
    %253 = arith.divf %251, %252 : vector<8x128xf32>
    %254 = arith.select %8, %248, %253 : vector<8x128xi1>, vector<8x128xf32>
    %255 = vector.extract_strided_slice %254 {offsets = [0, 0], sizes = [8, 32], strides = [1, 1]} : vector<8x128xf32> to vector<8x32xf32>
    %256 = vector.extract_strided_slice %254 {offsets = [0, 32], sizes = [8, 32], strides = [1, 1]} : vector<8x128xf32> to vector<8x32xf32>
    %257 = vector.extract_strided_slice %254 {offsets = [0, 64], sizes = [8, 32], strides = [1, 1]} : vector<8x128xf32> to vector<8x32xf32>
    %258 = vector.extract_strided_slice %254 {offsets = [0, 96], sizes = [8, 32], strides = [1, 1]} : vector<8x128xf32> to vector<8x32xf32>
    %259 = arith.mulf %256, %240 : vector<8x32xf32>
    %260 = arith.mulf %255, %257 : vector<8x32xf32>
    %261 = arith.addf %259, %260 : vector<8x32xf32>
    %262 = math.tanh %261 : vector<8x32xf32>
    %263 = arith.mulf %258, %262 : vector<8x32xf32>
    %c1_i32_84 = arith.constant 1 : i32
    %c8_i32_85 = arith.constant 8 : i32
    %264 = arith.muli %c1_i32_84, %c8_i32_85 : i32
    %265 = tpu.assume_multiple %264, 8 : i32
    %266 = arith.index_cast %265 : i32 to index
    %c0_86 = arith.constant 0 : index
    %267 = vector.load %arg12[%266, %c0_86] : memref<64x128xf32, #tpu.memory_space<vmem>>, vector<8x128xf32>
    %268 = arith.truncf %263 : vector<8x32xf32> to vector<8x32xbf16>
    %cst_87 = arith.constant dense<0.000000e+00> : vector<8x128xf32>
    %269 = tpu.matmul %268, %236, %cst_87 {dimension_numbers = #tpu.dot_dimension_numbers<[1], [0], [0], [1], [0, 0, 1, 1], [], []>} : vector<8x32xbf16>, vector<32x128xbf16>, vector<8x128xf32> -> vector<8x128xf32>
    %270 = arith.addf %267, %269 : vector<8x128xf32>
    %271 = math.tanh %270 : vector<8x128xf32>
    %272 = arith.negf %270 : vector<8x128xf32>
    %273 = math.exp %272 : vector<8x128xf32>
    %cst_88 = arith.constant 1.000000e+00 : f32
    %274 = vector.broadcast %cst_88 : f32 to vector<8x128xf32>
    %275 = arith.addf %274, %273 : vector<8x128xf32>
    %276 = arith.divf %274, %275 : vector<8x128xf32>
    %277 = arith.select %8, %271, %276 : vector<8x128xi1>, vector<8x128xf32>
    %278 = vector.extract_strided_slice %277 {offsets = [0, 0], sizes = [8, 32], strides = [1, 1]} : vector<8x128xf32> to vector<8x32xf32>
    %279 = vector.extract_strided_slice %277 {offsets = [0, 32], sizes = [8, 32], strides = [1, 1]} : vector<8x128xf32> to vector<8x32xf32>
    %280 = vector.extract_strided_slice %277 {offsets = [0, 64], sizes = [8, 32], strides = [1, 1]} : vector<8x128xf32> to vector<8x32xf32>
    %281 = vector.extract_strided_slice %277 {offsets = [0, 96], sizes = [8, 32], strides = [1, 1]} : vector<8x128xf32> to vector<8x32xf32>
    %282 = arith.mulf %279, %261 : vector<8x32xf32>
    %283 = arith.mulf %278, %280 : vector<8x32xf32>
    %284 = arith.addf %282, %283 : vector<8x32xf32>
    %285 = math.tanh %284 : vector<8x32xf32>
    %286 = arith.mulf %281, %285 : vector<8x32xf32>
    %c2_i32_89 = arith.constant 2 : i32
    %c8_i32_90 = arith.constant 8 : i32
    %287 = arith.muli %c2_i32_89, %c8_i32_90 : i32
    %288 = tpu.assume_multiple %287, 8 : i32
    %289 = arith.index_cast %288 : i32 to index
    %c0_91 = arith.constant 0 : index
    %290 = vector.load %arg12[%289, %c0_91] : memref<64x128xf32, #tpu.memory_space<vmem>>, vector<8x128xf32>
    %291 = arith.truncf %286 : vector<8x32xf32> to vector<8x32xbf16>
    %cst_92 = arith.constant dense<0.000000e+00> : vector<8x128xf32>
    %292 = tpu.matmul %291, %236, %cst_92 {dimension_numbers = #tpu.dot_dimension_numbers<[1], [0], [0], [1], [0, 0, 1, 1], [], []>} : vector<8x32xbf16>, vector<32x128xbf16>, vector<8x128xf32> -> vector<8x128xf32>
    %293 = arith.addf %290, %292 : vector<8x128xf32>
    %294 = math.tanh %293 : vector<8x128xf32>
    %295 = arith.negf %293 : vector<8x128xf32>
    %296 = math.exp %295 : vector<8x128xf32>
    %cst_93 = arith.constant 1.000000e+00 : f32
    %297 = vector.broadcast %cst_93 : f32 to vector<8x128xf32>
    %298 = arith.addf %297, %296 : vector<8x128xf32>
    %299 = arith.divf %297, %298 : vector<8x128xf32>
    %300 = arith.select %8, %294, %299 : vector<8x128xi1>, vector<8x128xf32>
    %301 = vector.extract_strided_slice %300 {offsets = [0, 0], sizes = [8, 32], strides = [1, 1]} : vector<8x128xf32> to vector<8x32xf32>
    %302 = vector.extract_strided_slice %300 {offsets = [0, 32], sizes = [8, 32], strides = [1, 1]} : vector<8x128xf32> to vector<8x32xf32>
    %303 = vector.extract_strided_slice %300 {offsets = [0, 64], sizes = [8, 32], strides = [1, 1]} : vector<8x128xf32> to vector<8x32xf32>
    %304 = vector.extract_strided_slice %300 {offsets = [0, 96], sizes = [8, 32], strides = [1, 1]} : vector<8x128xf32> to vector<8x32xf32>
    %305 = arith.mulf %302, %284 : vector<8x32xf32>
    %306 = arith.mulf %301, %303 : vector<8x32xf32>
    %307 = arith.addf %305, %306 : vector<8x32xf32>
    %308 = math.tanh %307 : vector<8x32xf32>
    %309 = arith.mulf %304, %308 : vector<8x32xf32>
    %c3_i32_94 = arith.constant 3 : i32
    %c8_i32_95 = arith.constant 8 : i32
    %310 = arith.muli %c3_i32_94, %c8_i32_95 : i32
    %311 = tpu.assume_multiple %310, 8 : i32
    %312 = arith.index_cast %311 : i32 to index
    %c0_96 = arith.constant 0 : index
    %313 = vector.load %arg12[%312, %c0_96] : memref<64x128xf32, #tpu.memory_space<vmem>>, vector<8x128xf32>
    %314 = arith.truncf %309 : vector<8x32xf32> to vector<8x32xbf16>
    %cst_97 = arith.constant dense<0.000000e+00> : vector<8x128xf32>
    %315 = tpu.matmul %314, %236, %cst_97 {dimension_numbers = #tpu.dot_dimension_numbers<[1], [0], [0], [1], [0, 0, 1, 1], [], []>} : vector<8x32xbf16>, vector<32x128xbf16>, vector<8x128xf32> -> vector<8x128xf32>
    %316 = arith.addf %313, %315 : vector<8x128xf32>
    %317 = math.tanh %316 : vector<8x128xf32>
    %318 = arith.negf %316 : vector<8x128xf32>
    %319 = math.exp %318 : vector<8x128xf32>
    %cst_98 = arith.constant 1.000000e+00 : f32
    %320 = vector.broadcast %cst_98 : f32 to vector<8x128xf32>
    %321 = arith.addf %320, %319 : vector<8x128xf32>
    %322 = arith.divf %320, %321 : vector<8x128xf32>
    %323 = arith.select %8, %317, %322 : vector<8x128xi1>, vector<8x128xf32>
    %324 = vector.extract_strided_slice %323 {offsets = [0, 0], sizes = [8, 32], strides = [1, 1]} : vector<8x128xf32> to vector<8x32xf32>
    %325 = vector.extract_strided_slice %323 {offsets = [0, 32], sizes = [8, 32], strides = [1, 1]} : vector<8x128xf32> to vector<8x32xf32>
    %326 = vector.extract_strided_slice %323 {offsets = [0, 64], sizes = [8, 32], strides = [1, 1]} : vector<8x128xf32> to vector<8x32xf32>
    %327 = vector.extract_strided_slice %323 {offsets = [0, 96], sizes = [8, 32], strides = [1, 1]} : vector<8x128xf32> to vector<8x32xf32>
    %328 = arith.mulf %325, %307 : vector<8x32xf32>
    %329 = arith.mulf %324, %326 : vector<8x32xf32>
    %330 = arith.addf %328, %329 : vector<8x32xf32>
    %331 = math.tanh %330 : vector<8x32xf32>
    %332 = arith.mulf %327, %331 : vector<8x32xf32>
    %c4_i32_99 = arith.constant 4 : i32
    %c8_i32_100 = arith.constant 8 : i32
    %333 = arith.muli %c4_i32_99, %c8_i32_100 : i32
    %334 = tpu.assume_multiple %333, 8 : i32
    %335 = arith.index_cast %334 : i32 to index
    %c0_101 = arith.constant 0 : index
    %336 = vector.load %arg12[%335, %c0_101] : memref<64x128xf32, #tpu.memory_space<vmem>>, vector<8x128xf32>
    %337 = arith.truncf %332 : vector<8x32xf32> to vector<8x32xbf16>
    %cst_102 = arith.constant dense<0.000000e+00> : vector<8x128xf32>
    %338 = tpu.matmul %337, %236, %cst_102 {dimension_numbers = #tpu.dot_dimension_numbers<[1], [0], [0], [1], [0, 0, 1, 1], [], []>} : vector<8x32xbf16>, vector<32x128xbf16>, vector<8x128xf32> -> vector<8x128xf32>
    %339 = arith.addf %336, %338 : vector<8x128xf32>
    %340 = math.tanh %339 : vector<8x128xf32>
    %341 = arith.negf %339 : vector<8x128xf32>
    %342 = math.exp %341 : vector<8x128xf32>
    %cst_103 = arith.constant 1.000000e+00 : f32
    %343 = vector.broadcast %cst_103 : f32 to vector<8x128xf32>
    %344 = arith.addf %343, %342 : vector<8x128xf32>
    %345 = arith.divf %343, %344 : vector<8x128xf32>
    %346 = arith.select %8, %340, %345 : vector<8x128xi1>, vector<8x128xf32>
    %347 = vector.extract_strided_slice %346 {offsets = [0, 0], sizes = [8, 32], strides = [1, 1]} : vector<8x128xf32> to vector<8x32xf32>
    %348 = vector.extract_strided_slice %346 {offsets = [0, 32], sizes = [8, 32], strides = [1, 1]} : vector<8x128xf32> to vector<8x32xf32>
    %349 = vector.extract_strided_slice %346 {offsets = [0, 64], sizes = [8, 32], strides = [1, 1]} : vector<8x128xf32> to vector<8x32xf32>
    %350 = vector.extract_strided_slice %346 {offsets = [0, 96], sizes = [8, 32], strides = [1, 1]} : vector<8x128xf32> to vector<8x32xf32>
    %351 = arith.mulf %348, %330 : vector<8x32xf32>
    %352 = arith.mulf %347, %349 : vector<8x32xf32>
    %353 = arith.addf %351, %352 : vector<8x32xf32>
    %354 = math.tanh %353 : vector<8x32xf32>
    %355 = arith.mulf %350, %354 : vector<8x32xf32>
    %c5_i32_104 = arith.constant 5 : i32
    %c8_i32_105 = arith.constant 8 : i32
    %356 = arith.muli %c5_i32_104, %c8_i32_105 : i32
    %357 = tpu.assume_multiple %356, 8 : i32
    %358 = arith.index_cast %357 : i32 to index
    %c0_106 = arith.constant 0 : index
    %359 = vector.load %arg12[%358, %c0_106] : memref<64x128xf32, #tpu.memory_space<vmem>>, vector<8x128xf32>
    %360 = arith.truncf %355 : vector<8x32xf32> to vector<8x32xbf16>
    %cst_107 = arith.constant dense<0.000000e+00> : vector<8x128xf32>
    %361 = tpu.matmul %360, %236, %cst_107 {dimension_numbers = #tpu.dot_dimension_numbers<[1], [0], [0], [1], [0, 0, 1, 1], [], []>} : vector<8x32xbf16>, vector<32x128xbf16>, vector<8x128xf32> -> vector<8x128xf32>
    %362 = arith.addf %359, %361 : vector<8x128xf32>
    %363 = math.tanh %362 : vector<8x128xf32>
    %364 = arith.negf %362 : vector<8x128xf32>
    %365 = math.exp %364 : vector<8x128xf32>
    %cst_108 = arith.constant 1.000000e+00 : f32
    %366 = vector.broadcast %cst_108 : f32 to vector<8x128xf32>
    %367 = arith.addf %366, %365 : vector<8x128xf32>
    %368 = arith.divf %366, %367 : vector<8x128xf32>
    %369 = arith.select %8, %363, %368 : vector<8x128xi1>, vector<8x128xf32>
    %370 = vector.extract_strided_slice %369 {offsets = [0, 0], sizes = [8, 32], strides = [1, 1]} : vector<8x128xf32> to vector<8x32xf32>
    %371 = vector.extract_strided_slice %369 {offsets = [0, 32], sizes = [8, 32], strides = [1, 1]} : vector<8x128xf32> to vector<8x32xf32>
    %372 = vector.extract_strided_slice %369 {offsets = [0, 64], sizes = [8, 32], strides = [1, 1]} : vector<8x128xf32> to vector<8x32xf32>
    %373 = vector.extract_strided_slice %369 {offsets = [0, 96], sizes = [8, 32], strides = [1, 1]} : vector<8x128xf32> to vector<8x32xf32>
    %374 = arith.mulf %371, %353 : vector<8x32xf32>
    %375 = arith.mulf %370, %372 : vector<8x32xf32>
    %376 = arith.addf %374, %375 : vector<8x32xf32>
    %377 = math.tanh %376 : vector<8x32xf32>
    %378 = arith.mulf %373, %377 : vector<8x32xf32>
    %c6_i32_109 = arith.constant 6 : i32
    %c8_i32_110 = arith.constant 8 : i32
    %379 = arith.muli %c6_i32_109, %c8_i32_110 : i32
    %380 = tpu.assume_multiple %379, 8 : i32
    %381 = arith.index_cast %380 : i32 to index
    %c0_111 = arith.constant 0 : index
    %382 = vector.load %arg12[%381, %c0_111] : memref<64x128xf32, #tpu.memory_space<vmem>>, vector<8x128xf32>
    %383 = arith.truncf %378 : vector<8x32xf32> to vector<8x32xbf16>
    %cst_112 = arith.constant dense<0.000000e+00> : vector<8x128xf32>
    %384 = tpu.matmul %383, %236, %cst_112 {dimension_numbers = #tpu.dot_dimension_numbers<[1], [0], [0], [1], [0, 0, 1, 1], [], []>} : vector<8x32xbf16>, vector<32x128xbf16>, vector<8x128xf32> -> vector<8x128xf32>
    %385 = arith.addf %382, %384 : vector<8x128xf32>
    %386 = math.tanh %385 : vector<8x128xf32>
    %387 = arith.negf %385 : vector<8x128xf32>
    %388 = math.exp %387 : vector<8x128xf32>
    %cst_113 = arith.constant 1.000000e+00 : f32
    %389 = vector.broadcast %cst_113 : f32 to vector<8x128xf32>
    %390 = arith.addf %389, %388 : vector<8x128xf32>
    %391 = arith.divf %389, %390 : vector<8x128xf32>
    %392 = arith.select %8, %386, %391 : vector<8x128xi1>, vector<8x128xf32>
    %393 = vector.extract_strided_slice %392 {offsets = [0, 0], sizes = [8, 32], strides = [1, 1]} : vector<8x128xf32> to vector<8x32xf32>
    %394 = vector.extract_strided_slice %392 {offsets = [0, 32], sizes = [8, 32], strides = [1, 1]} : vector<8x128xf32> to vector<8x32xf32>
    %395 = vector.extract_strided_slice %392 {offsets = [0, 64], sizes = [8, 32], strides = [1, 1]} : vector<8x128xf32> to vector<8x32xf32>
    %396 = vector.extract_strided_slice %392 {offsets = [0, 96], sizes = [8, 32], strides = [1, 1]} : vector<8x128xf32> to vector<8x32xf32>
    %397 = arith.mulf %394, %376 : vector<8x32xf32>
    %398 = arith.mulf %393, %395 : vector<8x32xf32>
    %399 = arith.addf %397, %398 : vector<8x32xf32>
    %400 = math.tanh %399 : vector<8x32xf32>
    %401 = arith.mulf %396, %400 : vector<8x32xf32>
    %c7_i32_114 = arith.constant 7 : i32
    %c8_i32_115 = arith.constant 8 : i32
    %402 = arith.muli %c7_i32_114, %c8_i32_115 : i32
    %403 = tpu.assume_multiple %402, 8 : i32
    %404 = arith.index_cast %403 : i32 to index
    %c0_116 = arith.constant 0 : index
    %405 = vector.load %arg12[%404, %c0_116] : memref<64x128xf32, #tpu.memory_space<vmem>>, vector<8x128xf32>
    %406 = arith.truncf %401 : vector<8x32xf32> to vector<8x32xbf16>
    %cst_117 = arith.constant dense<0.000000e+00> : vector<8x128xf32>
    %407 = tpu.matmul %406, %236, %cst_117 {dimension_numbers = #tpu.dot_dimension_numbers<[1], [0], [0], [1], [0, 0, 1, 1], [], []>} : vector<8x32xbf16>, vector<32x128xbf16>, vector<8x128xf32> -> vector<8x128xf32>
    %408 = arith.addf %405, %407 : vector<8x128xf32>
    %409 = math.tanh %408 : vector<8x128xf32>
    %410 = arith.negf %408 : vector<8x128xf32>
    %411 = math.exp %410 : vector<8x128xf32>
    %cst_118 = arith.constant 1.000000e+00 : f32
    %412 = vector.broadcast %cst_118 : f32 to vector<8x128xf32>
    %413 = arith.addf %412, %411 : vector<8x128xf32>
    %414 = arith.divf %412, %413 : vector<8x128xf32>
    %415 = arith.select %8, %409, %414 : vector<8x128xi1>, vector<8x128xf32>
    %416 = vector.extract_strided_slice %415 {offsets = [0, 0], sizes = [8, 32], strides = [1, 1]} : vector<8x128xf32> to vector<8x32xf32>
    %417 = vector.extract_strided_slice %415 {offsets = [0, 32], sizes = [8, 32], strides = [1, 1]} : vector<8x128xf32> to vector<8x32xf32>
    %418 = vector.extract_strided_slice %415 {offsets = [0, 64], sizes = [8, 32], strides = [1, 1]} : vector<8x128xf32> to vector<8x32xf32>
    %419 = vector.extract_strided_slice %415 {offsets = [0, 96], sizes = [8, 32], strides = [1, 1]} : vector<8x128xf32> to vector<8x32xf32>
    %420 = arith.mulf %417, %399 : vector<8x32xf32>
    %421 = arith.mulf %416, %418 : vector<8x32xf32>
    %422 = arith.addf %420, %421 : vector<8x32xf32>
    %423 = math.tanh %422 : vector<8x32xf32>
    %424 = arith.mulf %419, %423 : vector<8x32xf32>
    %c8_i32_119 = arith.constant 8 : i32
    %c1_120 = arith.constant 1 : index
    %c0_121 = arith.constant 0 : index
    %c0_122 = arith.constant 0 : index
    %425 = vector.load %arg13[%c1_120, %c0_121, %c0_122] : memref<2x8x32xf32, #tpu.memory_space<vmem>>, vector<1x8x32xf32>
    %426 = vector.shape_cast %425 : vector<1x8x32xf32> to vector<8x32xf32>
    %427 = vector.shape_cast %424 : vector<8x32xf32> to vector<1x8x32xf32>
    tpu.vector_store %arg13[%c1_120, %c0_121, %c0_122], %427 {strides = array<i32>} : memref<2x8x32xf32, #tpu.memory_space<vmem>>, vector<1x8x32xf32>,
    %c1_123 = arith.constant 1 : index
    %c0_124 = arith.constant 0 : index
    %c0_125 = arith.constant 0 : index
    %428 = vector.load %arg14[%c1_123, %c0_124, %c0_125] : memref<2x8x32xf32, #tpu.memory_space<vmem>>, vector<1x8x32xf32>
    %429 = vector.shape_cast %428 : vector<1x8x32xf32> to vector<8x32xf32>
    %430 = vector.shape_cast %422 : vector<8x32xf32> to vector<1x8x32xf32>
    tpu.vector_store %arg14[%c1_123, %c0_124, %c0_125], %430 {strides = array<i32>} : memref<2x8x32xf32, #tpu.memory_space<vmem>>, vector<1x8x32xf32>,
    %c1_i32_126 = arith.constant 1 : i32
    %431 = arith.cmpi eq, %arg0, %c1_i32_126 : i32
    %432 = arith.extui %431 : i1 to i32
    %c0_i32_127 = arith.constant 0 : i32
    %433 = arith.cmpi ne, %432, %c0_i32_127 : i32
    scf.if %433 {
      %c1_128 = arith.constant 1 : index
      %c0_129 = arith.constant 0 : index
      %c0_130 = arith.constant 0 : index
      %434 = vector.load %arg13[%c1_128, %c0_129, %c0_130] : memref<2x8x32xf32, #tpu.memory_space<vmem>>, vector<1x8x32xf32>
      %435 = vector.shape_cast %434 : vector<1x8x32xf32> to vector<8x32xf32>
      %436 = arith.truncf %435 : vector<8x32xf32> to vector<8x32xbf16>
      %c0_131 = arith.constant 0 : index
      %c0_132 = arith.constant 0 : index
      %437 = vector.load %arg8[%c0_131, %c0_132] : memref<32x2xbf16, #tpu.memory_space<vmem>>, vector<32x2xbf16>
      %cst_133 = arith.constant dense<0.000000e+00> : vector<8x2xf32>
      %438 = tpu.matmul %436, %437, %cst_133 {dimension_numbers = #tpu.dot_dimension_numbers<[1], [0], [0], [1], [0, 0, 1, 1], [], []>} : vector<8x32xbf16>, vector<32x2xbf16>, vector<8x2xf32> -> vector<8x2xf32>
      %c0_134 = arith.constant 0 : index
      %c0_135 = arith.constant 0 : index
      %439 = vector.load %arg9[%c0_134, %c0_135] : memref<1x2xf32, #tpu.memory_space<vmem>>, vector<1x2xf32>
      %440 = vector.broadcast %439 : vector<1x2xf32> to vector<8x2xf32>
      %441 = arith.addf %438, %440 : vector<8x2xf32>
      %cst_136 = arith.constant dense<0xFF800000> : vector<8xf32>
      %442 = vector.multi_reduction <maximumf>, %441, %cst_136 [1] : vector<8x2xf32> to vector<8xf32>
      %443 = vector.shape_cast %442 : vector<8xf32> to vector<8x1xf32>
      %444 = vector.broadcast %443 : vector<8x1xf32> to vector<8x2xf32>
      %445 = arith.subf %441, %444 : vector<8x2xf32>
      %446 = math.exp %445 : vector<8x2xf32>
      %cst_137 = arith.constant dense<0.000000e+00> : vector<8xf32>
      %447 = vector.multi_reduction <add>, %446, %cst_137 [1] : vector<8x2xf32> to vector<8xf32>
      %448 = vector.shape_cast %447 : vector<8xf32> to vector<8x1xf32>
      %449 = vector.broadcast %448 : vector<8x1xf32> to vector<8x2xf32>
      %450 = arith.divf %446, %449 : vector<8x2xf32>
      %c0_138 = arith.constant 0 : index
      %c0_139 = arith.constant 0 : index
      %451 = vector.load %arg10[%c0_138, %c0_139] : memref<8x2xf32, #tpu.memory_space<vmem>>, vector<8x2xf32>
      tpu.vector_store %arg10[%c0_138, %c0_139], %450 {strides = array<i32>} : memref<8x2xf32, #tpu.memory_space<vmem>>, vector<8x2xf32>,
    } else {
    }
    return
  }
  func.func @transform_0(%arg0: i32) -> (i32, i32) {
    %c0_i32 = arith.constant 0 : i32
    %c0_i32_0 = arith.constant 0 : i32
    return %arg0, %c0_i32 : i32, i32
  }
  func.func @transform_1(%arg0: i32) -> (i32, i32) {
    %c0_i32 = arith.constant 0 : i32
    %c0_i32_0 = arith.constant 0 : i32
    %c0_i32_1 = arith.constant 0 : i32
    return %c0_i32, %c0_i32_0 : i32, i32
  }
  func.func @transform_2(%arg0: i32) -> (i32, i32) {
    %c0_i32 = arith.constant 0 : i32
    %c0_i32_0 = arith.constant 0 : i32
    %c0_i32_1 = arith.constant 0 : i32
    return %c0_i32, %c0_i32_0 : i32, i32
  }
  func.func @transform_3(%arg0: i32) -> (i32, i32) {
    %c0_i32 = arith.constant 0 : i32
    %c0_i32_0 = arith.constant 0 : i32
    %c0_i32_1 = arith.constant 0 : i32
    return %c0_i32, %c0_i32_0 : i32, i32
  }
  func.func @transform_4(%arg0: i32) -> (i32, i32) {
    %c0_i32 = arith.constant 0 : i32
    %c0_i32_0 = arith.constant 0 : i32
    %c0_i32_1 = arith.constant 0 : i32
    return %c0_i32, %c0_i32_0 : i32, i32
  }
  func.func @transform_5(%arg0: i32) -> (i32, i32) {
    %c0_i32 = arith.constant 0 : i32
    %c0_i32_0 = arith.constant 0 : i32
    %c0_i32_1 = arith.constant 0 : i32
    return %c0_i32, %c0_i32_0 : i32, i32
  }
  func.func @transform_6(%arg0: i32) -> (i32, i32) {
    %c0_i32 = arith.constant 0 : i32
    %c0_i32_0 = arith.constant 0 : i32
    %c0_i32_1 = arith.constant 0 : i32
    return %c0_i32, %c0_i32_0 : i32, i32
  }
  func.func @transform_7(%arg0: i32) -> (i32, i32) {
    %c0_i32 = arith.constant 0 : i32
    %c0_i32_0 = arith.constant 0 : i32
    %c0_i32_1 = arith.constant 0 : i32
    return %c0_i32, %c0_i32_0 : i32, i32
  }
  func.func @transform_8(%arg0: i32) -> (i32, i32) {
    %c0_i32 = arith.constant 0 : i32
    %c0_i32_0 = arith.constant 0 : i32
    %c0_i32_1 = arith.constant 0 : i32
    return %c0_i32, %c0_i32_0 : i32, i32
  }
  func.func @transform_9(%arg0: i32) -> (i32, i32) {
    %c0_i32 = arith.constant 0 : i32
    %c0_i32_0 = arith.constant 0 : i32
    %c0_i32_1 = arith.constant 0 : i32
    return %c0_i32, %c0_i32_0 : i32, i32
  }
}

</mosaic_0001>

<llo_original>
// kernel: simple_lstm_forward.1
$region0: #{simple_lstm_forward.1}
  #allocation0 [shape = 'u32[]', space=smem, size = 0x4, offset = 0x4, fixed_abs, tag = 'smem constant byte address 0x4 - core index']
  #allocation1 [shape = 'u32[72,128]{1,0:T(1,128)}', space=vmem, size = 0x9000, scoped, tag = 'internal scratch']
  #allocation2 [shape = 'f32[64,32]{1,0:T(8,128)}', space=vmem, size = 0x8000, scoped, tag = 'scratch operand']
  #allocation3 [shape = 'f32[64,128]{1,0:T(8,128)}', space=vmem, size = 0x8000, scoped, tag = 'scratch operand']
  #allocation4 [shape = 'f32[2,8,32]{2,1,0:T(8,128)}', space=vmem, size = 0x2000, scoped, tag = 'scratch operand']
  #allocation5 [shape = 'f32[2,8,32]{2,1,0:T(8,128)}', space=vmem, size = 0x2000, scoped, tag = 'scratch operand']
  %s0 = inlined_call_operand.vmem [shape: f32[128,4], index: 0, kind: input, shape index: {}]
  %s1 = inlined_call_operand.vmem [shape: bf16[4,128], index: 1, kind: input, shape index: {}]
  %s2 = inlined_call_operand.vmem [shape: bf16[32,128], index: 2, kind: input, shape index: {}]
  %s3 = inlined_call_operand.vmem [shape: f32[1,128], index: 3, kind: input, shape index: {}]
  %s4 = inlined_call_operand.vmem [shape: bf16[32,128], index: 4, kind: input, shape index: {}]
  %s5 = inlined_call_operand.vmem [shape: bf16[32,128], index: 5, kind: input, shape index: {}]
  %s6 = inlined_call_operand.vmem [shape: f32[1,128], index: 6, kind: input, shape index: {}]
  %s7 = inlined_call_operand.vmem [shape: bf16[32,2], index: 7, kind: input, shape index: {}]
  %s8 = inlined_call_operand.vmem [shape: f32[1,2], index: 8, kind: input, shape index: {}]
  %s9 = inlined_call_operand.vmem [shape: f32[8,2], index: 9, kind: output, shape index: {}]
  %s10 = sld [smem:[#allocation0]]
  $region77: #{simple_lstm_forward.1} parent=0
    _
  %s12 = ssub.s32 1, %s10
  %s13 = scalar_select 0, %s12, %s10
  loop: start=0, step=1, limit=4
  $region2: #{simple_lstm_forward.1} parent=0 // loop_pre_header
    _
  $region3: #{simple_lstm_forward.1} parent=0 // loop_header
    %s15 = sphi 0, %s19
    %p16 = scmp.ge.s32.totalorder %s15, 4
    %s25 = sphi 0, %s27
    %s28 = sphi 0, %s25
    %s29 = sphi 0, %s28
    %s45 = sphi 0, %s29
    %s49 = sphi 0, %s49
    %s51 = sphi 0, %s49
    %s52 = sphi 0, %s51
    %s66 = sphi 0, %s52
    %s70 = sphi 0, %s70
    %s72 = sphi 0, %s70
    %s73 = sphi 0, %s72
    %s87 = sphi 0, %s73
    %s91 = sphi 0, %s91
    %s93 = sphi 0, %s91
    %s94 = sphi 0, %s93
    %s108 = sphi 0, %s94
    %s112 = sphi 0, %s112
    %s114 = sphi 0, %s112
    %s115 = sphi 0, %s114
    %s129 = sphi 0, %s115
    %s133 = sphi 0, %s133
    %s135 = sphi 0, %s133
    %s136 = sphi 0, %s135
    %s150 = sphi 0, %s136
    %s154 = sphi 0, %s154
    %s156 = sphi 0, %s154
    %s157 = sphi 0, %s156
    %s171 = sphi 0, %s157
    %s175 = sphi 0, %s175
    %s177 = sphi 0, %s175
    %s178 = sphi 0, %s177
    %s192 = sphi 0, %s178
    %s196 = sphi 0, %s196
    %s198 = sphi 0, %s196
    %s199 = sphi 0, %s198
    %s213 = sphi 0, %s199
    %s217 = sphi 0, %s217
    %s219 = sphi 0, %s217
    %s220 = sphi 0, %s219
    %s234 = sphi 0, %s220
  $region4: #{simple_lstm_forward.1} parent=0 // loop_header_branch
    %18 = sbr.rel (%p16) target = $region8
  $region5: #{simple_lstm_forward.1} parent=0 // loop_body
    %s20 = ssub.s32 %s15, 1
    %s21 = ssub.s32 %s15, 2
    %s22 = sadd.s32 %s15, 1
    %s23 = ssub.s32 %s15, %s22
    %p24 = scmp.eq.s32.totalorder %s23, 0
    %s26 = sadd.s32 %s25, 1
    %s27 = scalar_select %p24, %s25, %s26
    %p30 = pneg %p24
    %p31 = scmp.eq.s32.totalorder %s15, 1
    %p32 = por %p30, %p31
    %p33 = scmp.ne.s32.totalorder %s25, %s28
    %p34 = scmp.eq.s32.totalorder %s15, 0
    %p35 = por %p33, %p34
    %p36 = scmp.ne.s32.totalorder %s25, %s28
    %p37 = scmp.eq.s32.totalorder %s20, 1
    %p38 = por %p36, %p37
    %p39 = scmp.ne.s32.totalorder %s28, %s29
    %p40 = scmp.eq.s32.totalorder %s20, 0
    %p41 = por %p39, %p40
    %p42 = scmp.ne.s32.totalorder %s28, %s29
    %p43 = scmp.eq.s32.totalorder %s21, 1
    %p44 = por %p42, %p43
    %p46 = scmp.ne.s32.totalorder %s29, %s45
    %p47 = scmp.eq.s32.totalorder %s21, 0
    %p48 = por %p46, %p47
    %s50 = sadd.s32 %s49, 1
    %p53 = scmp.eq.s32.totalorder %s15, 1
    %p54 = scmp.ne.s32.totalorder %s49, %s51
    %p55 = scmp.eq.s32.totalorder %s15, 0
    %p56 = por %p54, %p55
    %p57 = scmp.ne.s32.totalorder %s49, %s51
    %p58 = scmp.eq.s32.totalorder %s20, 1
    %p59 = por %p57, %p58
    %p60 = scmp.ne.s32.totalorder %s51, %s52
    %p61 = scmp.eq.s32.totalorder %s20, 0
    %p62 = por %p60, %p61
    %p63 = scmp.ne.s32.totalorder %s51, %s52
    %p64 = scmp.eq.s32.totalorder %s21, 1
    %p65 = por %p63, %p64
    %p67 = scmp.ne.s32.totalorder %s52, %s66
    %p68 = scmp.eq.s32.totalorder %s21, 0
    %p69 = por %p67, %p68
    %s71 = sadd.s32 %s70, 1
    %p74 = scmp.eq.s32.totalorder %s15, 1
    %p75 = scmp.ne.s32.totalorder %s70, %s72
    %p76 = scmp.eq.s32.totalorder %s15, 0
    %p77 = por %p75, %p76
    %p78 = scmp.ne.s32.totalorder %s70, %s72
    %p79 = scmp.eq.s32.totalorder %s20, 1
    %p80 = por %p78, %p79
    %p81 = scmp.ne.s32.totalorder %s72, %s73
    %p82 = scmp.eq.s32.totalorder %s20, 0
    %p83 = por %p81, %p82
    %p84 = scmp.ne.s32.totalorder %s72, %s73
    %p85 = scmp.eq.s32.totalorder %s21, 1
    %p86 = por %p84, %p85
    %p88 = scmp.ne.s32.totalorder %s73, %s87
    %p89 = scmp.eq.s32.totalorder %s21, 0
    %p90 = por %p88, %p89
    %s92 = sadd.s32 %s91, 1
    %p95 = scmp.eq.s32.totalorder %s15, 1
    %p96 = scmp.ne.s32.totalorder %s91, %s93
    %p97 = scmp.eq.s32.totalorder %s15, 0
    %p98 = por %p96, %p97
    %p99 = scmp.ne.s32.totalorder %s91, %s93
    %p100 = scmp.eq.s32.totalorder %s20, 1
    %p101 = por %p99, %p100
    %p102 = scmp.ne.s32.totalorder %s93, %s94
    %p103 = scmp.eq.s32.totalorder %s20, 0
    %p104 = por %p102, %p103
    %p105 = scmp.ne.s32.totalorder %s93, %s94
    %p106 = scmp.eq.s32.totalorder %s21, 1
    %p107 = por %p105, %p106
    %p109 = scmp.ne.s32.totalorder %s94, %s108
    %p110 = scmp.eq.s32.totalorder %s21, 0
    %p111 = por %p109, %p110
    %s113 = sadd.s32 %s112, 1
    %p116 = scmp.eq.s32.totalorder %s15, 1
    %p117 = scmp.ne.s32.totalorder %s112, %s114
    %p118 = scmp.eq.s32.totalorder %s15, 0
    %p119 = por %p117, %p118
    %p120 = scmp.ne.s32.totalorder %s112, %s114
    %p121 = scmp.eq.s32.totalorder %s20, 1
    %p122 = por %p120, %p121
    %p123 = scmp.ne.s32.totalorder %s114, %s115
    %p124 = scmp.eq.s32.totalorder %s20, 0
    %p125 = por %p123, %p124
    %p126 = scmp.ne.s32.totalorder %s114, %s115
    %p127 = scmp.eq.s32.totalorder %s21, 1
    %p128 = por %p126, %p127
    %p130 = scmp.ne.s32.totalorder %s115, %s129
    %p131 = scmp.eq.s32.totalorder %s21, 0
    %p132 = por %p130, %p131
    %s134 = sadd.s32 %s133, 1
    %p137 = scmp.eq.s32.totalorder %s15, 1
    %p138 = scmp.ne.s32.totalorder %s133, %s135
    %p139 = scmp.eq.s32.totalorder %s15, 0
    %p140 = por %p138, %p139
    %p141 = scmp.ne.s32.totalorder %s133, %s135
    %p142 = scmp.eq.s32.totalorder %s20, 1
    %p143 = por %p141, %p142
    %p144 = scmp.ne.s32.totalorder %s135, %s136
    %p145 = scmp.eq.s32.totalorder %s20, 0
    %p146 = por %p144, %p145
    %p147 = scmp.ne.s32.totalorder %s135, %s136
    %p148 = scmp.eq.s32.totalorder %s21, 1
    %p149 = por %p147, %p148
    %p151 = scmp.ne.s32.totalorder %s136, %s150
    %p152 = scmp.eq.s32.totalorder %s21, 0
    %p153 = por %p151, %p152
    %s155 = sadd.s32 %s154, 1
    %p158 = scmp.eq.s32.totalorder %s15, 1
    %p159 = scmp.ne.s32.totalorder %s154, %s156
    %p160 = scmp.eq.s32.totalorder %s15, 0
    %p161 = por %p159, %p160
    %p162 = scmp.ne.s32.totalorder %s154, %s156
    %p163 = scmp.eq.s32.totalorder %s20, 1
    %p164 = por %p162, %p163
    %p165 = scmp.ne.s32.totalorder %s156, %s157
    %p166 = scmp.eq.s32.totalorder %s20, 0
    %p167 = por %p165, %p166
    %p168 = scmp.ne.s32.totalorder %s156, %s157
    %p169 = scmp.eq.s32.totalorder %s21, 1
    %p170 = por %p168, %p169
    %p172 = scmp.ne.s32.totalorder %s157, %s171
    %p173 = scmp.eq.s32.totalorder %s21, 0
    %p174 = por %p172, %p173
    %s176 = sadd.s32 %s175, 1
    %p179 = scmp.eq.s32.totalorder %s15, 1
    %p180 = scmp.ne.s32.totalorder %s175, %s177
    %p181 = scmp.eq.s32.totalorder %s15, 0
    %p182 = por %p180, %p181
    %p183 = scmp.ne.s32.totalorder %s175, %s177
    %p184 = scmp.eq.s32.totalorder %s20, 1
    %p185 = por %p183, %p184
    %p186 = scmp.ne.s32.totalorder %s177, %s178
    %p187 = scmp.eq.s32.totalorder %s20, 0
    %p188 = por %p186, %p187
    %p189 = scmp.ne.s32.totalorder %s177, %s178
    %p190 = scmp.eq.s32.totalorder %s21, 1
    %p191 = por %p189, %p190
    %p193 = scmp.ne.s32.totalorder %s178, %s192
    %p194 = scmp.eq.s32.totalorder %s21, 0
    %p195 = por %p193, %p194
    %s197 = sadd.s32 %s196, 1
    %p200 = scmp.eq.s32.totalorder %s15, 1
    %p201 = scmp.ne.s32.totalorder %s196, %s198
    %p202 = scmp.eq.s32.totalorder %s15, 0
    %p203 = por %p201, %p202
    %p204 = scmp.ne.s32.totalorder %s196, %s198
    %p205 = scmp.eq.s32.totalorder %s20, 1
    %p206 = por %p204, %p205
    %p207 = scmp.ne.s32.totalorder %s198, %s199
    %p208 = scmp.eq.s32.totalorder %s20, 0
    %p209 = por %p207, %p208
    %p210 = scmp.ne.s32.totalorder %s198, %s199
    %p211 = scmp.eq.s32.totalorder %s21, 1
    %p212 = por %p210, %p211
    %p214 = scmp.ne.s32.totalorder %s199, %s213
    %p215 = scmp.eq.s32.totalorder %s21, 0
    %p216 = por %p214, %p215
    %s218 = sadd.s32 %s217, 1
    %p221 = scmp.eq.s32.totalorder %s15, 1
    %p222 = scmp.ne.s32.totalorder %s217, %s219
    %p223 = scmp.eq.s32.totalorder %s15, 0
    %p224 = por %p222, %p223
    %p225 = scmp.ne.s32.totalorder %s217, %s219
    %p226 = scmp.eq.s32.totalorder %s20, 1
    %p227 = por %p225, %p226
    %p228 = scmp.ne.s32.totalorder %s219, %s220
    %p229 = scmp.eq.s32.totalorder %s20, 0
    %p230 = por %p228, %p229
    %p231 = scmp.ne.s32.totalorder %s219, %s220
    %p232 = scmp.eq.s32.totalorder %s21, 1
    %p233 = por %p231, %p232
    %p235 = scmp.ne.s32.totalorder %s220, %s234
    %p236 = scmp.eq.s32.totalorder %s21, 0
    %p237 = por %p235, %p236
    %p238 = scmp.le.s32.totalorder 1, %s15
    %p239 = scmp.lt.s32.totalorder %s15, 3
    %p240 = pnand %p238, %p239
    %p241 = pneg %p240
    // Predicated region
    $region9: #{simple_lstm_forward.1} parent=5 // pred_check
      _
    $region10: #{simple_lstm_forward.1} parent=5 // pred_check_branch
      %243 = sbr.rel (%p240) target = $region12
    $region11: #{simple_lstm_forward.1} parent=5 // pred_region
      %s244 = ssub.s32 %s15, 1
      // Predicated region
      $region13: #{simple_lstm_forward.1} parent=11 // pred_check
        %p245 = pneg %p62
      $region14: #{simple_lstm_forward.1} parent=11 // pred_check_branch
        %247 = sbr.rel (%p245) target = $region16
      $region15: #{simple_lstm_forward.1} parent=11 // pred_region
        _
      $region16: #{simple_lstm_forward.1} parent=11 // pred_fallthru
        _
      // Predicated region
      $region17: #{simple_lstm_forward.1} parent=11 // pred_check
        %p248 = pneg %p83
      $region18: #{simple_lstm_forward.1} parent=11 // pred_check_branch
        %250 = sbr.rel (%p248) target = $region20
      $region19: #{simple_lstm_forward.1} parent=11 // pred_region
        _
      $region20: #{simple_lstm_forward.1} parent=11 // pred_fallthru
        _
      // Predicated region
      $region21: #{simple_lstm_forward.1} parent=11 // pred_check
        %p251 = pneg %p104
      $region22: #{simple_lstm_forward.1} parent=11 // pred_check_branch
        %253 = sbr.rel (%p251) target = $region24
      $region23: #{simple_lstm_forward.1} parent=11 // pred_region
        _
      $region24: #{simple_lstm_forward.1} parent=11 // pred_fallthru
        _
      // Predicated region
      $region25: #{simple_lstm_forward.1} parent=11 // pred_check
        %p254 = pneg %p125
      $region26: #{simple_lstm_forward.1} parent=11 // pred_check_branch
        %256 = sbr.rel (%p254) target = $region28
      $region27: #{simple_lstm_forward.1} parent=11 // pred_region
        _
      $region28: #{simple_lstm_forward.1} parent=11 // pred_fallthru
        _
      // Predicated region
      $region29: #{simple_lstm_forward.1} parent=11 // pred_check
        %p257 = pneg %p146
      $region30: #{simple_lstm_forward.1} parent=11 // pred_check_branch
        %259 = sbr.rel (%p257) target = $region32
      $region31: #{simple_lstm_forward.1} parent=11 // pred_region
        _
      $region32: #{simple_lstm_forward.1} parent=11 // pred_fallthru
        _
      // Predicated region
      $region33: #{simple_lstm_forward.1} parent=11 // pred_check
        %p260 = pneg %p167
      $region34: #{simple_lstm_forward.1} parent=11 // pred_check_branch
        %262 = sbr.rel (%p260) target = $region36
      $region35: #{simple_lstm_forward.1} parent=11 // pred_region
        _
      $region36: #{simple_lstm_forward.1} parent=11 // pred_fallthru
        _
      // Predicated region
      $region37: #{simple_lstm_forward.1} parent=11 // pred_check
        %p263 = pneg %p188
      $region38: #{simple_lstm_forward.1} parent=11 // pred_check_branch
        %265 = sbr.rel (%p263) target = $region40
      $region39: #{simple_lstm_forward.1} parent=11 // pred_region
        _
      $region40: #{simple_lstm_forward.1} parent=11 // pred_fallthru
        _
      // Predicated region
      $region41: #{simple_lstm_forward.1} parent=11 // pred_check
        %p266 = pneg %p209
      $region42: #{simple_lstm_forward.1} parent=11 // pred_check_branch
        %268 = sbr.rel (%p266) target = $region44
      $region43: #{simple_lstm_forward.1} parent=11 // pred_region
        _
      $region44: #{simple_lstm_forward.1} parent=11 // pred_fallthru
        _
    $region12: #{simple_lstm_forward.1} parent=5 // pred_fallthru
      _
    %p269 = scmp.lt.s32.totalorder %s15, 2
    // Predicated region
    $region45: #{simple_lstm_forward.1} parent=5 // pred_check
      %p270 = pneg %p269
    $region46: #{simple_lstm_forward.1} parent=5 // pred_check_branch
      %272 = sbr.rel (%p270) target = $region48
    $region47: #{simple_lstm_forward.1} parent=5 // pred_region
      // Predicated region
      $region49: #{simple_lstm_forward.1} parent=47 // pred_check
        %p273 = pneg %p35
      $region50: #{simple_lstm_forward.1} parent=47 // pred_check_branch
        %275 = sbr.rel (%p273) target = $region52
      $region51: #{simple_lstm_forward.1} parent=47 // pred_region
        %s276 = smul.u32 8, %s15
        %p277 = scmp.lt.s32.totalorder %s276, 15
        %s278 = scalar_select %p277, %s276, 15
        %s279 = smul.addr %s278, 8
        %s280 = scalar_lea.vmem %s0, %s279
        %s281 = smul.u32 8, %s15
      $region52: #{simple_lstm_forward.1} parent=47 // pred_fallthru
        _
    $region48: #{simple_lstm_forward.1} parent=5 // pred_fallthru
      _
    %p282 = scmp.le.s32.totalorder 1, %s15
    %p283 = scmp.lt.s32.totalorder %s15, 3
    %p284 = pnand %p282, %p283
    %p285 = pneg %p284
    // Predicated region
    $region53: #{simple_lstm_forward.1} parent=5 // pred_check
      _
    $region54: #{simple_lstm_forward.1} parent=5 // pred_check_branch
      %287 = sbr.rel (%p284) target = $region56
    $region55: #{simple_lstm_forward.1} parent=5 // pred_region
      %s288 = ssub.s32 %s15, 1
      %s289 = smul.u32 8, %s20
      %p290 = scmp.lt.s32.totalorder %s289, 15
      %s291 = scalar_select %p290, %s289, 15
      %s292 = smul.addr %s291, 8
      %s293 = scalar_lea.vmem %s0, %s292
      %p294 = pneg %p41
      %p295 = pneg %p38
      %p296 = pneg %p62
      %p297 = pneg %p59
      %p298 = pneg %p83
      %p299 = pneg %p80
      %p300 = pneg %p104
      %p301 = pneg %p101
      %p302 = pneg %p125
      %p303 = pneg %p122
      %p304 = pneg %p146
      %p305 = pneg %p143
      %p306 = pneg %p167
      %p307 = pneg %p164
      %p308 = pneg %p188
      %p309 = pneg %p185
      %p310 = pneg %p209
      %p311 = pneg %p206
      %p312 = pneg %p230
      %p313 = pneg %p227
      %s314 = smul.u32 8, %s20
      %p315 = scmp.lt.s32.totalorder %s314, 15
      %s316 = scalar_select %p315, %s314, 15
      %s317 = smul.addr %s316, 8
      %s318 = scalar_lea.vmem %s0, %s317
      %s319 = smul.u32 8, %s20
      %p321 = scmp.eq.s32.totalorder %s20, 0
      // Predicated region
      $region57: #{simple_lstm_forward.1} parent=55 // pred_check
        %p322 = pneg %p321
      $region58: #{simple_lstm_forward.1} parent=55 // pred_check_branch
        %324 = sbr.rel (%p322) target = $region60
      $region59: #{simple_lstm_forward.1} parent=55 // pred_region
        %vm325 = vcmask 261120
        %326 = vst.msk [vmem:[#allocation4] sm:$0xff] %vm325, 0.0
        %327 = vst.msk [vmem:[#allocation4 + $0x8] sm:$0xff] %vm325, 0.0
        %328 = vst.msk [vmem:[#allocation5] sm:$0xff] %vm325, 0.0
        %329 = vst.msk [vmem:[#allocation5 + $0x8] sm:$0xff] %vm325, 0.0
      $region60: #{simple_lstm_forward.1} parent=55 // pred_fallthru
        _
      %v330 = vlaneseq
      %v331 = vand.u32 %v330, 127
      %vm332 = vcmp.ge.s32.totalorder %v331, 64
      %vm333 = vcmp.lt.s32.totalorder %v331, 96
      %vm334 = vmand %vm332, %vm333
      %v335 = vld [vmem:[%s318] sm:$0xff]
      %v336 = vld [vmem:[%s318 + $0x8] sm:$0xff]
      %v337 = vld [vmem:[%s318 + $0x10] sm:$0xff]
      %v338 = vld [vmem:[%s318 + $0x18] sm:$0xff]
      %v339 = vld [vmem:[%s318 + $0x20] sm:$0xff]
      %v340 = vld [vmem:[%s318 + $0x28] sm:$0xff]
      %v341 = vld [vmem:[%s318 + $0x30] sm:$0xff]
      %v342 = vld [vmem:[%s318 + $0x38] sm:$0xff]
      %v343 = vpack.c.bf16 %v336, %v335
      %v344 = vpack.c.bf16 %v338, %v337
      %v345 = vpack.c.bf16 %v340, %v339
      %v346 = vpack.c.bf16 %v342, %v341
      %v347 = vld [vmem:[%s1] sm:$0x3]
      %v348 = vld [vmem:[%s3] sm:$0x1]
      %v350 = vperm.slane %v348, 0
      %vm352 = vcmask 31744
      %v354 = vsel %vm352, %v343, 0
      %v357 = vsel %vm352, %v344, 0
      %v360 = vsel %vm352, %v345, 0
      %v363 = vsel %vm352, %v346, 0
      %vm365 = vcmask 1041408
      %v367 = vsel %vm365, %v347, 0
      %369 = vmatpush.bf16.msra.mxu0 0
      %370 = vmatpush.bf16.msra.mxu0 0
      %371 = vmatpush.bf16.msra.mxu0 0
      %372 = vmatpush.bf16.msra.mxu0 0
      %373 = vmatpush.bf16.msra.mxu0 0
      %374 = vmatpush.bf16.msra.mxu0 0
      %375 = vmatpush.bf16.msra.mxu0 0
      %376 = vmatpush.bf16.msra.mxu0 %v367
      %377 = vmatmul.bf16.gmra.mxu0 %v354
      %v378 = vpop.f32.mrf.mxu0
      %v379 = vadd.f32 %v350, %v378
      %v380 = vpop.f32.mrf.mxu0
      %v381 = vadd.f32 %v350, %v380
      %382 = vmatmul.bf16.gmra.mxu0 %v357
      %v383 = vpop.f32.mrf.mxu0
      %v384 = vadd.f32 %v350, %v383
      %v385 = vpop.f32.mrf.mxu0
      %v386 = vadd.f32 %v350, %v385
      %387 = vmatmul.bf16.gmra.mxu0 %v360
      %v388 = vpop.f32.mrf.mxu0
      %v389 = vadd.f32 %v350, %v388
      %v390 = vpop.f32.mrf.mxu0
      %v391 = vadd.f32 %v350, %v390
      %392 = vmatmul.bf16.gmra.mxu0 %v363
      %v393 = vpop.f32.mrf.mxu0
      %v394 = vadd.f32 %v350, %v393
      %v395 = vpop.f32.mrf.mxu0
      %v396 = vadd.f32 %v350, %v395
      %397 = vdwg.mxu0
      %398 = vst [vmem:[#allocation3] sm:$0xff] %v379
      %399 = vst [vmem:[#allocation3 + $0x8] sm:$0xff] %v381
      %400 = vst [vmem:[#allocation3 + $0x10] sm:$0xff] %v384
      %401 = vst [vmem:[#allocation3 + $0x18] sm:$0xff] %v386
      %402 = vst [vmem:[#allocation3 + $0x20] sm:$0xff] %v389
      %403 = vst [vmem:[#allocation3 + $0x28] sm:$0xff] %v391
      %404 = vst [vmem:[#allocation3 + $0x30] sm:$0xff] %v394
      %405 = vst [vmem:[#allocation3 + $0x38] sm:$0xff] %v396
      %v406 = vld [vmem:[%s2] sm:$0xf]
      %v407 = vld [vmem:[%s2 + $0x4] sm:$0xf]
      %v408 = vld [vmem:[%s2 + $0x8] sm:$0xf]
      %v409 = vld [vmem:[%s2 + $0xc] sm:$0xf]
      %v410 = vld [vmem:[#allocation4] sm:$0xff]
      %v411 = vld [vmem:[#allocation5] sm:$0xff]
      %v412 = vld [vmem:[#allocation3] sm:$0xff]
      %v413 = vpack.c.bf16 %v410, %v410
      %v418 = vunpack.c.l.b16 %v406
      %v419 = vunpack.c.l.b16 %v407
      %v420 = vunpack.c.l.b16 %v408
      %v421 = vunpack.c.l.b16 %v409
      %v422 = vpack.c.b16 %v419, %v418
      %v423 = vpack.c.b16 %v421, %v420
      %vm426 = vcmask 261120
      %v428 = vsel %vm426, %v413, 0
      %430 = vmatpush.bf16.msra.mxu0 0
      %431 = vmatpush.bf16.msra.mxu0 0
      %432 = vmatpush.bf16.msra.mxu0 0
      %433 = vmatpush.bf16.msra.mxu0 0
      %434 = vmatpush.bf16.msra.mxu0 0
      %435 = vmatpush.bf16.msra.mxu0 0
      %436 = vmatpush.bf16.msra.mxu0 %v423
      %437 = vmatpush.bf16.msra.mxu0 %v422
      %438 = vmatmul.bf16.gmra.mxu0 %v428
      %v439 = vpop.f32.mrf.mxu0
      %v440 = vadd.f32 0.0, %v439
      %v441 = vpop.f32.mrf.mxu0
      %442 = vdwg.mxu0
      %v443 = vadd.f32 %v412, %v440
      %v444 = vtanh.pop %v443
      %v445 = vxor.u32 %v443, 2147483648
      %v446 = vmul.f32 %v445, 1.442695
      %v447 = vpow.pop %v446
      %v448 = vadd.f32 %v447, 1.0
      %v449 = vrcp.pop %v448
      %v450 = vmul.f32 %v448, %v449
      %v451 = vsub.f32 1.0, %v450
      %v452 = vmul.f32 %v449, %v451
      %v453 = vadd.f32 %v449, %v452
      %vm454 = vweird.f32 %v448
      %vm455 = vweird.f32 %v449
      %vm456 = vmor %vm454, %vm455
      %v457 = vsel %vm456, %v449, %v453
      %v458 = vand.u32 2147483647, %v448
      %vm459 = vcmp.eq.f32.partialorder %v458, 8.507059e+37
      %v460 = vand.u32 %v448, 2147483648
      %v461 = vor.u32 1.1754944e-38, %v460
      %v462 = vsel %vm459, %v461, %v457
      %v463 = vmul.f32 1.0, %v462
      %v464 = vsel %vm334, %v444, %v463
      %466 = vrot.lane.b32.xlu0 %v411, 32
      %v467 = vpop.permute.xlu0 %466
      %v469 = vmul.f32 %v464, %v467
      %471 = vrot.lane.b32.xlu0 %v464, 64
      %v472 = vpop.permute.xlu0 %471
      %v474 = vmul.f32 %v464, %v472
      %476 = vrot.lane.b32.xlu0 %v474, 32
      %v477 = vpop.permute.xlu0 %476
      %v479 = vadd.f32 %v469, %v477
      %v480 = vtanh.pop %v479
      %482 = vrot.lane.b32.xlu0 %v480, 64
      %v483 = vpop.permute.xlu0 %482
      %v485 = vmul.f32 %v464, %v483
      %487 = vrot.lane.b32.xlu0 %v485, 32
      %v488 = vpop.permute.xlu0 %487
      %490 = vst.msk [vmem:[#allocation2] sm:$0xff] %vm426, %v488
      %s491 = scalar_lea.vmem [#allocation3], 8
      %v492 = vld [vmem:[%s491] sm:$0xff]
      %v493 = vpack.c.bf16 %v485, %v485
      %495 = vrot.lane.b32.xlu0 %v493, 32
      %v496 = vpop.permute.xlu0 %495
      %v498 = vsel %vm426, %v496, 0
      %500 = vmatpush.bf16.msra.mxu0 0
      %501 = vmatpush.bf16.msra.mxu0 0
      %502 = vmatpush.bf16.msra.mxu0 0
      %503 = vmatpush.bf16.msra.mxu0 0
      %504 = vmatpush.bf16.msra.mxu0 0
      %505 = vmatpush.bf16.msra.mxu0 0
      %506 = vmatpush.bf16.msra.mxu0 %v423
      %507 = vmatpush.bf16.msra.mxu0 %v422
      %508 = vmatmul.bf16.gmra.mxu0 %v498
      %v509 = vpop.f32.mrf.mxu0
      %v510 = vadd.f32 0.0, %v509
      %v511 = vpop.f32.mrf.mxu0
      %512 = vdwg.mxu0
      %v513 = vadd.f32 %v492, %v510
      %v514 = vtanh.pop %v513
      %v515 = vxor.u32 %v513, 2147483648
      %v516 = vmul.f32 %v515, 1.442695
      %v517 = vpow.pop %v516
      %v518 = vadd.f32 %v517, 1.0
      %v519 = vrcp.pop %v518
      %v520 = vmul.f32 %v518, %v519
      %v521 = vsub.f32 1.0, %v520
      %v522 = vmul.f32 %v519, %v521
      %v523 = vadd.f32 %v519, %v522
      %vm524 = vweird.f32 %v518
      %vm525 = vweird.f32 %v519
      %vm526 = vmor %vm524, %vm525
      %v527 = vsel %vm526, %v519, %v523
      %v528 = vand.u32 2147483647, %v518
      %vm529 = vcmp.eq.f32.partialorder %v528, 8.507059e+37
      %v530 = vand.u32 %v518, 2147483648
      %v531 = vor.u32 1.1754944e-38, %v530
      %v532 = vsel %vm529, %v531, %v527
      %v533 = vmul.f32 1.0, %v532
      %v534 = vsel %vm334, %v514, %v533
      %v535 = vmul.f32 %v534, %v479
      %537 = vrot.lane.b32.xlu0 %v534, 64
      %v538 = vpop.permute.xlu0 %537
      %v540 = vmul.f32 %v534, %v538
      %542 = vrot.lane.b32.xlu0 %v540, 32
      %v543 = vpop.permute.xlu0 %542
      %v545 = vadd.f32 %v535, %v543
      %v546 = vtanh.pop %v545
      %548 = vrot.lane.b32.xlu0 %v546, 64
      %v549 = vpop.permute.xlu0 %548
      %v551 = vmul.f32 %v534, %v549
      %553 = vrot.lane.b32.xlu0 %v551, 32
      %v554 = vpop.permute.xlu0 %553
      %s556 = scalar_lea.vmem [#allocation2], 8
      %557 = vst.msk [vmem:[%s556] sm:$0xff] %vm426, %v554
      %s558 = scalar_lea.vmem [#allocation3], 16
      %v559 = vld [vmem:[%s558] sm:$0xff]
      %v560 = vpack.c.bf16 %v551, %v551
      %562 = vrot.lane.b32.xlu0 %v560, 32
      %v563 = vpop.permute.xlu0 %562
      %v565 = vsel %vm426, %v563, 0
      %567 = vmatpush.bf16.msra.mxu0 0
      %568 = vmatpush.bf16.msra.mxu0 0
      %569 = vmatpush.bf16.msra.mxu0 0
      %570 = vmatpush.bf16.msra.mxu0 0
      %571 = vmatpush.bf16.msra.mxu0 0
      %572 = vmatpush.bf16.msra.mxu0 0
      %573 = vmatpush.bf16.msra.mxu0 %v423
      %574 = vmatpush.bf16.msra.mxu0 %v422
      %575 = vmatmul.bf16.gmra.mxu0 %v565
      %v576 = vpop.f32.mrf.mxu0
      %v577 = vadd.f32 0.0, %v576
      %v578 = vpop.f32.mrf.mxu0
      %579 = vdwg.mxu0
      %v580 = vadd.f32 %v559, %v577
      %v581 = vtanh.pop %v580
      %v582 = vxor.u32 %v580, 2147483648
      %v583 = vmul.f32 %v582, 1.442695
      %v584 = vpow.pop %v583
      %v585 = vadd.f32 %v584, 1.0
      %v586 = vrcp.pop %v585
      %v587 = vmul.f32 %v585, %v586
      %v588 = vsub.f32 1.0, %v587
      %v589 = vmul.f32 %v586, %v588
      %v590 = vadd.f32 %v586, %v589
      %vm591 = vweird.f32 %v585
      %vm592 = vweird.f32 %v586
      %vm593 = vmor %vm591, %vm592
      %v594 = vsel %vm593, %v586, %v590
      %v595 = vand.u32 2147483647, %v585
      %vm596 = vcmp.eq.f32.partialorder %v595, 8.507059e+37
      %v597 = vand.u32 %v585, 2147483648
      %v598 = vor.u32 1.1754944e-38, %v597
      %v599 = vsel %vm596, %v598, %v594
      %v600 = vmul.f32 1.0, %v599
      %v601 = vsel %vm334, %v581, %v600
      %v602 = vmul.f32 %v601, %v545
      %604 = vrot.lane.b32.xlu0 %v601, 64
      %v605 = vpop.permute.xlu0 %604
      %v607 = vmul.f32 %v601, %v605
      %609 = vrot.lane.b32.xlu0 %v607, 32
      %v610 = vpop.permute.xlu0 %609
      %v612 = vadd.f32 %v602, %v610
      %v613 = vtanh.pop %v612
      %615 = vrot.lane.b32.xlu0 %v613, 64
      %v616 = vpop.permute.xlu0 %615
      %v618 = vmul.f32 %v601, %v616
      %620 = vrot.lane.b32.xlu0 %v618, 32
      %v621 = vpop.permute.xlu0 %620
      %s623 = scalar_lea.vmem [#allocation2], 16
      %624 = vst.msk [vmem:[%s623] sm:$0xff] %vm426, %v621
      %s625 = scalar_lea.vmem [#allocation3], 24
      %v626 = vld [vmem:[%s625] sm:$0xff]
      %v627 = vpack.c.bf16 %v618, %v618
      %629 = vrot.lane.b32.xlu0 %v627, 32
      %v630 = vpop.permute.xlu0 %629
      %v632 = vsel %vm426, %v630, 0
      %634 = vmatpush.bf16.msra.mxu0 0
      %635 = vmatpush.bf16.msra.mxu0 0
      %636 = vmatpush.bf16.msra.mxu0 0
      %637 = vmatpush.bf16.msra.mxu0 0
      %638 = vmatpush.bf16.msra.mxu0 0
      %639 = vmatpush.bf16.msra.mxu0 0
      %640 = vmatpush.bf16.msra.mxu0 %v423
      %641 = vmatpush.bf16.msra.mxu0 %v422
      %642 = vmatmul.bf16.gmra.mxu0 %v632
      %v643 = vpop.f32.mrf.mxu0
      %v644 = vadd.f32 0.0, %v643
      %v645 = vpop.f32.mrf.mxu0
      %646 = vdwg.mxu0
      %v647 = vadd.f32 %v626, %v644
      %v648 = vtanh.pop %v647
      %v649 = vxor.u32 %v647, 2147483648
      %v650 = vmul.f32 %v649, 1.442695
      %v651 = vpow.pop %v650
      %v652 = vadd.f32 %v651, 1.0
      %v653 = vrcp.pop %v652
      %v654 = vmul.f32 %v652, %v653
      %v655 = vsub.f32 1.0, %v654
      %v656 = vmul.f32 %v653, %v655
      %v657 = vadd.f32 %v653, %v656
      %vm658 = vweird.f32 %v652
      %vm659 = vweird.f32 %v653
      %vm660 = vmor %vm658, %vm659
      %v661 = vsel %vm660, %v653, %v657
      %v662 = vand.u32 2147483647, %v652
      %vm663 = vcmp.eq.f32.partialorder %v662, 8.507059e+37
      %v664 = vand.u32 %v652, 2147483648
      %v665 = vor.u32 1.1754944e-38, %v664
      %v666 = vsel %vm663, %v665, %v661
      %v667 = vmul.f32 1.0, %v666
      %v668 = vsel %vm334, %v648, %v667
      %v669 = vmul.f32 %v668, %v612
      %671 = vrot.lane.b32.xlu0 %v668, 64
      %v672 = vpop.permute.xlu0 %671
      %v674 = vmul.f32 %v668, %v672
      %676 = vrot.lane.b32.xlu0 %v674, 32
      %v677 = vpop.permute.xlu0 %676
      %v679 = vadd.f32 %v669, %v677
      %v680 = vtanh.pop %v679
      %682 = vrot.lane.b32.xlu0 %v680, 64
      %v683 = vpop.permute.xlu0 %682
      %v685 = vmul.f32 %v668, %v683
      %687 = vrot.lane.b32.xlu0 %v685, 32
      %v688 = vpop.permute.xlu0 %687
      %s690 = scalar_lea.vmem [#allocation2], 24
      %691 = vst.msk [vmem:[%s690] sm:$0xff] %vm426, %v688
      %s692 = scalar_lea.vmem [#allocation3], 32
      %v693 = vld [vmem:[%s692] sm:$0xff]
      %v694 = vpack.c.bf16 %v685, %v685
      %696 = vrot.lane.b32.xlu0 %v694, 32
      %v697 = vpop.permute.xlu0 %696
      %v699 = vsel %vm426, %v697, 0
      %701 = vmatpush.bf16.msra.mxu0 0
      %702 = vmatpush.bf16.msra.mxu0 0
      %703 = vmatpush.bf16.msra.mxu0 0
      %704 = vmatpush.bf16.msra.mxu0 0
      %705 = vmatpush.bf16.msra.mxu0 0
      %706 = vmatpush.bf16.msra.mxu0 0
      %707 = vmatpush.bf16.msra.mxu0 %v423
      %708 = vmatpush.bf16.msra.mxu0 %v422
      %709 = vmatmul.bf16.gmra.mxu0 %v699
      %v710 = vpop.f32.mrf.mxu0
      %v711 = vadd.f32 0.0, %v710
      %v712 = vpop.f32.mrf.mxu0
      %713 = vdwg.mxu0
      %v714 = vadd.f32 %v693, %v711
      %v715 = vtanh.pop %v714
      %v716 = vxor.u32 %v714, 2147483648
      %v717 = vmul.f32 %v716, 1.442695
      %v718 = vpow.pop %v717
      %v719 = vadd.f32 %v718, 1.0
      %v720 = vrcp.pop %v719
      %v721 = vmul.f32 %v719, %v720
      %v722 = vsub.f32 1.0, %v721
      %v723 = vmul.f32 %v720, %v722
      %v724 = vadd.f32 %v720, %v723
      %vm725 = vweird.f32 %v719
      %vm726 = vweird.f32 %v720
      %vm727 = vmor %vm725, %vm726
      %v728 = vsel %vm727, %v720, %v724
      %v729 = vand.u32 2147483647, %v719
      %vm730 = vcmp.eq.f32.partialorder %v729, 8.507059e+37
      %v731 = vand.u32 %v719, 2147483648
      %v732 = vor.u32 1.1754944e-38, %v731
      %v733 = vsel %vm730, %v732, %v728
      %v734 = vmul.f32 1.0, %v733
      %v735 = vsel %vm334, %v715, %v734
      %v736 = vmul.f32 %v735, %v679
      %738 = vrot.lane.b32.xlu0 %v735, 64
      %v739 = vpop.permute.xlu0 %738
      %v741 = vmul.f32 %v735, %v739
      %743 = vrot.lane.b32.xlu0 %v741, 32
      %v744 = vpop.permute.xlu0 %743
      %v746 = vadd.f32 %v736, %v744
      %v747 = vtanh.pop %v746
      %749 = vrot.lane.b32.xlu0 %v747, 64
      %v750 = vpop.permute.xlu0 %749
      %v752 = vmul.f32 %v735, %v750
      %754 = vrot.lane.b32.xlu0 %v752, 32
      %v755 = vpop.permute.xlu0 %754
      %s757 = scalar_lea.vmem [#allocation2], 32
      %758 = vst.msk [vmem:[%s757] sm:$0xff] %vm426, %v755
      %s759 = scalar_lea.vmem [#allocation3], 40
      %v760 = vld [vmem:[%s759] sm:$0xff]
      %v761 = vpack.c.bf16 %v752, %v752
      %763 = vrot.lane.b32.xlu0 %v761, 32
      %v764 = vpop.permute.xlu0 %763
      %v766 = vsel %vm426, %v764, 0
      %768 = vmatpush.bf16.msra.mxu0 0
      %769 = vmatpush.bf16.msra.mxu0 0
      %770 = vmatpush.bf16.msra.mxu0 0
      %771 = vmatpush.bf16.msra.mxu0 0
      %772 = vmatpush.bf16.msra.mxu0 0
      %773 = vmatpush.bf16.msra.mxu0 0
      %774 = vmatpush.bf16.msra.mxu0 %v423
      %775 = vmatpush.bf16.msra.mxu0 %v422
      %776 = vmatmul.bf16.gmra.mxu0 %v766
      %v777 = vpop.f32.mrf.mxu0
      %v778 = vadd.f32 0.0, %v777
      %v779 = vpop.f32.mrf.mxu0
      %780 = vdwg.mxu0
      %v781 = vadd.f32 %v760, %v778
      %v782 = vtanh.pop %v781
      %v783 = vxor.u32 %v781, 2147483648
      %v784 = vmul.f32 %v783, 1.442695
      %v785 = vpow.pop %v784
      %v786 = vadd.f32 %v785, 1.0
      %v787 = vrcp.pop %v786
      %v788 = vmul.f32 %v786, %v787
      %v789 = vsub.f32 1.0, %v788
      %v790 = vmul.f32 %v787, %v789
      %v791 = vadd.f32 %v787, %v790
      %vm792 = vweird.f32 %v786
      %vm793 = vweird.f32 %v787
      %vm794 = vmor %vm792, %vm793
      %v795 = vsel %vm794, %v787, %v791
      %v796 = vand.u32 2147483647, %v786
      %vm797 = vcmp.eq.f32.partialorder %v796, 8.507059e+37
      %v798 = vand.u32 %v786, 2147483648
      %v799 = vor.u32 1.1754944e-38, %v798
      %v800 = vsel %vm797, %v799, %v795
      %v801 = vmul.f32 1.0, %v800
      %v802 = vsel %vm334, %v782, %v801
      %v803 = vmul.f32 %v802, %v746
      %805 = vrot.lane.b32.xlu0 %v802, 64
      %v806 = vpop.permute.xlu0 %805
      %v808 = vmul.f32 %v802, %v806
      %810 = vrot.lane.b32.xlu0 %v808, 32
      %v811 = vpop.permute.xlu0 %810
      %v813 = vadd.f32 %v803, %v811
      %v814 = vtanh.pop %v813
      %816 = vrot.lane.b32.xlu0 %v814, 64
      %v817 = vpop.permute.xlu0 %816
      %v819 = vmul.f32 %v802, %v817
      %821 = vrot.lane.b32.xlu0 %v819, 32
      %v822 = vpop.permute.xlu0 %821
      %s824 = scalar_lea.vmem [#allocation2], 40
      %825 = vst.msk [vmem:[%s824] sm:$0xff] %vm426, %v822
      %s826 = scalar_lea.vmem [#allocation3], 48
      %v827 = vld [vmem:[%s826] sm:$0xff]
      %v828 = vpack.c.bf16 %v819, %v819
      %830 = vrot.lane.b32.xlu0 %v828, 32
      %v831 = vpop.permute.xlu0 %830
      %v833 = vsel %vm426, %v831, 0
      %835 = vmatpush.bf16.msra.mxu0 0
      %836 = vmatpush.bf16.msra.mxu0 0
      %837 = vmatpush.bf16.msra.mxu0 0
      %838 = vmatpush.bf16.msra.mxu0 0
      %839 = vmatpush.bf16.msra.mxu0 0
      %840 = vmatpush.bf16.msra.mxu0 0
      %841 = vmatpush.bf16.msra.mxu0 %v423
      %842 = vmatpush.bf16.msra.mxu0 %v422
      %843 = vmatmul.bf16.gmra.mxu0 %v833
      %v844 = vpop.f32.mrf.mxu0
      %v845 = vadd.f32 0.0, %v844
      %v846 = vpop.f32.mrf.mxu0
      %847 = vdwg.mxu0
      %v848 = vadd.f32 %v827, %v845
      %v849 = vtanh.pop %v848
      %v850 = vxor.u32 %v848, 2147483648
      %v851 = vmul.f32 %v850, 1.442695
      %v852 = vpow.pop %v851
      %v853 = vadd.f32 %v852, 1.0
      %v854 = vrcp.pop %v853
      %v855 = vmul.f32 %v853, %v854
      %v856 = vsub.f32 1.0, %v855
      %v857 = vmul.f32 %v854, %v856
      %v858 = vadd.f32 %v854, %v857
      %vm859 = vweird.f32 %v853
      %vm860 = vweird.f32 %v854
      %vm861 = vmor %vm859, %vm860
      %v862 = vsel %vm861, %v854, %v858
      %v863 = vand.u32 2147483647, %v853
      %vm864 = vcmp.eq.f32.partialorder %v863, 8.507059e+37
      %v865 = vand.u32 %v853, 2147483648
      %v866 = vor.u32 1.1754944e-38, %v865
      %v867 = vsel %vm864, %v866, %v862
      %v868 = vmul.f32 1.0, %v867
      %v869 = vsel %vm334, %v849, %v868
      %v870 = vmul.f32 %v869, %v813
      %872 = vrot.lane.b32.xlu0 %v869, 64
      %v873 = vpop.permute.xlu0 %872
      %v875 = vmul.f32 %v869, %v873
      %877 = vrot.lane.b32.xlu0 %v875, 32
      %v878 = vpop.permute.xlu0 %877
      %v880 = vadd.f32 %v870, %v878
      %v881 = vtanh.pop %v880
      %883 = vrot.lane.b32.xlu0 %v881, 64
      %v884 = vpop.permute.xlu0 %883
      %v886 = vmul.f32 %v869, %v884
      %888 = vrot.lane.b32.xlu0 %v886, 32
      %v889 = vpop.permute.xlu0 %888
      %s891 = scalar_lea.vmem [#allocation2], 48
      %892 = vst.msk [vmem:[%s891] sm:$0xff] %vm426, %v889
      %s893 = scalar_lea.vmem [#allocation3], 56
      %v894 = vld [vmem:[%s893] sm:$0xff]
      %v895 = vpack.c.bf16 %v886, %v886
      %897 = vrot.lane.b32.xlu0 %v895, 32
      %v898 = vpop.permute.xlu0 %897
      %v900 = vsel %vm426, %v898, 0
      %902 = vmatpush.bf16.msra.mxu0 0
      %903 = vmatpush.bf16.msra.mxu0 0
      %904 = vmatpush.bf16.msra.mxu0 0
      %905 = vmatpush.bf16.msra.mxu0 0
      %906 = vmatpush.bf16.msra.mxu0 0
      %907 = vmatpush.bf16.msra.mxu0 0
      %908 = vmatpush.bf16.msra.mxu0 %v423
      %909 = vmatpush.bf16.msra.mxu0 %v422
      %910 = vmatmul.bf16.gmra.mxu0 %v900
      %v911 = vpop.f32.mrf.mxu0
      %v912 = vadd.f32 0.0, %v911
      %v913 = vpop.f32.mrf.mxu0
      %914 = vdwg.mxu0
      %v915 = vadd.f32 %v894, %v912
      %v916 = vtanh.pop %v915
      %v917 = vxor.u32 %v915, 2147483648
      %v918 = vmul.f32 %v917, 1.442695
      %v919 = vpow.pop %v918
      %v920 = vadd.f32 %v919, 1.0
      %v921 = vrcp.pop %v920
      %v922 = vmul.f32 %v920, %v921
      %v923 = vsub.f32 1.0, %v922
      %v924 = vmul.f32 %v921, %v923
      %v925 = vadd.f32 %v921, %v924
      %vm926 = vweird.f32 %v920
      %vm927 = vweird.f32 %v921
      %vm928 = vmor %vm926, %vm927
      %v929 = vsel %vm928, %v921, %v925
      %v930 = vand.u32 2147483647, %v920
      %vm931 = vcmp.eq.f32.partialorder %v930, 8.507059e+37
      %v932 = vand.u32 %v920, 2147483648
      %v933 = vor.u32 1.1754944e-38, %v932
      %v934 = vsel %vm931, %v933, %v929
      %v935 = vmul.f32 1.0, %v934
      %v936 = vsel %vm334, %v916, %v935
      %v937 = vmul.f32 %v936, %v880
      %939 = vrot.lane.b32.xlu0 %v936, 64
      %v940 = vpop.permute.xlu0 %939
      %v942 = vmul.f32 %v936, %v940
      %944 = vrot.lane.b32.xlu0 %v942, 32
      %v945 = vpop.permute.xlu0 %944
      %v947 = vadd.f32 %v937, %v945
      %v948 = vtanh.pop %v947
      %950 = vrot.lane.b32.xlu0 %v948, 64
      %v951 = vpop.permute.xlu0 %950
      %v953 = vmul.f32 %v936, %v951
      %955 = vrot.lane.b32.xlu0 %v953, 32
      %v956 = vpop.permute.xlu0 %955
      %s958 = scalar_lea.vmem [#allocation2], 56
      %959 = vst.msk [vmem:[%s958] sm:$0xff] %vm426, %v956
      %960 = vst.msk [vmem:[#allocation4] sm:$0xff] %vm426, %v956
      %962 = vrot.lane.b32.xlu0 %v947, 96
      %v963 = vpop.permute.xlu0 %962
      %965 = vst.msk [vmem:[#allocation5] sm:$0xff] %vm426, %v963
      %v966 = vld [vmem:[#allocation2] sm:$0xff]
      %v967 = vld [vmem:[#allocation2 + $0x8] sm:$0xff]
      %v968 = vld [vmem:[#allocation2 + $0x10] sm:$0xff]
      %v969 = vld [vmem:[#allocation2 + $0x18] sm:$0xff]
      %v970 = vld [vmem:[#allocation2 + $0x20] sm:$0xff]
      %v971 = vld [vmem:[#allocation2 + $0x28] sm:$0xff]
      %v972 = vld [vmem:[#allocation2 + $0x30] sm:$0xff]
      %v973 = vld [vmem:[#allocation2 + $0x38] sm:$0xff]
      %v974 = vpack.c.bf16 %v967, %v966
      %v975 = vpack.c.bf16 %v969, %v968
      %v976 = vpack.c.bf16 %v971, %v970
      %v977 = vpack.c.bf16 %v973, %v972
      %v978 = vld [vmem:[%s4] sm:$0xf]
      %v979 = vld [vmem:[%s4 + $0x4] sm:$0xf]
      %v980 = vld [vmem:[%s4 + $0x8] sm:$0xf]
      %v981 = vld [vmem:[%s4 + $0xc] sm:$0xf]
      %v982 = vld [vmem:[%s6] sm:$0x1]
      %v984 = vperm.slane %v982, 0
      %v990 = vunpack.c.l.b16 %v978
      %v991 = vunpack.c.l.b16 %v979
      %v992 = vunpack.c.l.b16 %v980
      %v993 = vunpack.c.l.b16 %v981
      %v994 = vpack.c.b16 %v991, %v990
      %v995 = vpack.c.b16 %v993, %v992
      %v999 = vsel %vm426, %v974, 0
      %v1002 = vsel %vm426, %v975, 0
      %v1005 = vsel %vm426, %v976, 0
      %v1008 = vsel %vm426, %v977, 0
      %1010 = vmatpush.bf16.msra.mxu0 0
      %1011 = vmatpush.bf16.msra.mxu0 0
      %1012 = vmatpush.bf16.msra.mxu0 0
      %1013 = vmatpush.bf16.msra.mxu0 0
      %1014 = vmatpush.bf16.msra.mxu0 0
      %1015 = vmatpush.bf16.msra.mxu0 0
      %1016 = vmatpush.bf16.msra.mxu0 %v995
      %1017 = vmatpush.bf16.msra.mxu0 %v994
      %1018 = vmatmul.bf16.gmra.mxu0 %v999
      %v1019 = vpop.f32.mrf.mxu0
      %v1020 = vadd.f32 %v984, %v1019
      %v1021 = vpop.f32.mrf.mxu0
      %v1022 = vadd.f32 %v984, %v1021
      %1023 = vmatmul.bf16.gmra.mxu0 %v1002
      %v1024 = vpop.f32.mrf.mxu0
      %v1025 = vadd.f32 %v984, %v1024
      %v1026 = vpop.f32.mrf.mxu0
      %v1027 = vadd.f32 %v984, %v1026
      %1028 = vmatmul.bf16.gmra.mxu0 %v1005
      %v1029 = vpop.f32.mrf.mxu0
      %v1030 = vadd.f32 %v984, %v1029
      %v1031 = vpop.f32.mrf.mxu0
      %v1032 = vadd.f32 %v984, %v1031
      %1033 = vmatmul.bf16.gmra.mxu0 %v1008
      %v1034 = vpop.f32.mrf.mxu0
      %v1035 = vadd.f32 %v984, %v1034
      %v1036 = vpop.f32.mrf.mxu0
      %v1037 = vadd.f32 %v984, %v1036
      %1038 = vdwg.mxu0
      %1039 = vst [vmem:[#allocation3] sm:$0xff] %v1020
      %1040 = vst [vmem:[#allocation3 + $0x8] sm:$0xff] %v1022
      %1041 = vst [vmem:[#allocation3 + $0x10] sm:$0xff] %v1025
      %1042 = vst [vmem:[#allocation3 + $0x18] sm:$0xff] %v1027
      %1043 = vst [vmem:[#allocation3 + $0x20] sm:$0xff] %v1030
      %1044 = vst [vmem:[#allocation3 + $0x28] sm:$0xff] %v1032
      %1045 = vst [vmem:[#allocation3 + $0x30] sm:$0xff] %v1035
      %1046 = vst [vmem:[#allocation3 + $0x38] sm:$0xff] %v1037
      %v1047 = vld [vmem:[%s5] sm:$0xf]
      %v1048 = vld [vmem:[%s5 + $0x4] sm:$0xf]
      %v1049 = vld [vmem:[%s5 + $0x8] sm:$0xf]
      %v1050 = vld [vmem:[%s5 + $0xc] sm:$0xf]
      %s1051 = scalar_lea.vmem [#allocation4], 8
      %v1052 = vld [vmem:[%s1051] sm:$0xff]
      %s1053 = scalar_lea.vmem [#allocation5], 8
      %v1054 = vld [vmem:[%s1053] sm:$0xff]
      %v1055 = vld [vmem:[#allocation3] sm:$0xff]
      %v1056 = vpack.c.bf16 %v1052, %v1052
      %v1061 = vunpack.c.l.b16 %v1047
      %v1062 = vunpack.c.l.b16 %v1048
      %v1063 = vunpack.c.l.b16 %v1049
      %v1064 = vunpack.c.l.b16 %v1050
      %v1065 = vpack.c.b16 %v1062, %v1061
      %v1066 = vpack.c.b16 %v1064, %v1063
      %v1070 = vsel %vm426, %v1056, 0
      %1072 = vmatpush.bf16.msra.mxu0 0
      %1073 = vmatpush.bf16.msra.mxu0 0
      %1074 = vmatpush.bf16.msra.mxu0 0
      %1075 = vmatpush.bf16.msra.mxu0 0
      %1076 = vmatpush.bf16.msra.mxu0 0
      %1077 = vmatpush.bf16.msra.mxu0 0
      %1078 = vmatpush.bf16.msra.mxu0 %v1066
      %1079 = vmatpush.bf16.msra.mxu0 %v1065
      %1080 = vmatmul.bf16.gmra.mxu0 %v1070
      %v1081 = vpop.f32.mrf.mxu0
      %v1082 = vadd.f32 0.0, %v1081
      %v1083 = vpop.f32.mrf.mxu0
      %1084 = vdwg.mxu0
      %v1085 = vadd.f32 %v1055, %v1082
      %v1086 = vtanh.pop %v1085
      %v1087 = vxor.u32 %v1085, 2147483648
      %v1088 = vmul.f32 %v1087, 1.442695
      %v1089 = vpow.pop %v1088
      %v1090 = vadd.f32 %v1089, 1.0
      %v1091 = vrcp.pop %v1090
      %v1092 = vmul.f32 %v1090, %v1091
      %v1093 = vsub.f32 1.0, %v1092
      %v1094 = vmul.f32 %v1091, %v1093
      %v1095 = vadd.f32 %v1091, %v1094
      %vm1096 = vweird.f32 %v1090
      %vm1097 = vweird.f32 %v1091
      %vm1098 = vmor %vm1096, %vm1097
      %v1099 = vsel %vm1098, %v1091, %v1095
      %v1100 = vand.u32 2147483647, %v1090
      %vm1101 = vcmp.eq.f32.partialorder %v1100, 8.507059e+37
      %v1102 = vand.u32 %v1090, 2147483648
      %v1103 = vor.u32 1.1754944e-38, %v1102
      %v1104 = vsel %vm1101, %v1103, %v1099
      %v1105 = vmul.f32 1.0, %v1104
      %v1106 = vsel %vm334, %v1086, %v1105
      %1108 = vrot.lane.b32.xlu0 %v1054, 32
      %v1109 = vpop.permute.xlu0 %1108
      %v1111 = vmul.f32 %v1106, %v1109
      %1113 = vrot.lane.b32.xlu0 %v1106, 64
      %v1114 = vpop.permute.xlu0 %1113
      %v1116 = vmul.f32 %v1106, %v1114
      %1118 = vrot.lane.b32.xlu0 %v1116, 32
      %v1119 = vpop.permute.xlu0 %1118
      %v1121 = vadd.f32 %v1111, %v1119
      %v1122 = vtanh.pop %v1121
      %1124 = vrot.lane.b32.xlu0 %v1122, 64
      %v1125 = vpop.permute.xlu0 %1124
      %v1127 = vmul.f32 %v1106, %v1125
      %v1128 = vld [vmem:[%s491] sm:$0xff]
      %v1129 = vpack.c.bf16 %v1127, %v1127
      %1131 = vrot.lane.b32.xlu0 %v1129, 32
      %v1132 = vpop.permute.xlu0 %1131
      %v1134 = vsel %vm426, %v1132, 0
      %1136 = vmatpush.bf16.msra.mxu0 0
      %1137 = vmatpush.bf16.msra.mxu0 0
      %1138 = vmatpush.bf16.msra.mxu0 0
      %1139 = vmatpush.bf16.msra.mxu0 0
      %1140 = vmatpush.bf16.msra.mxu0 0
      %1141 = vmatpush.bf16.msra.mxu0 0
      %1142 = vmatpush.bf16.msra.mxu0 %v1066
      %1143 = vmatpush.bf16.msra.mxu0 %v1065
      %1144 = vmatmul.bf16.gmra.mxu0 %v1134
      %v1145 = vpop.f32.mrf.mxu0
      %v1146 = vadd.f32 0.0, %v1145
      %v1147 = vpop.f32.mrf.mxu0
      %1148 = vdwg.mxu0
      %v1149 = vadd.f32 %v1128, %v1146
      %v1150 = vtanh.pop %v1149
      %v1151 = vxor.u32 %v1149, 2147483648
      %v1152 = vmul.f32 %v1151, 1.442695
      %v1153 = vpow.pop %v1152
      %v1154 = vadd.f32 %v1153, 1.0
      %v1155 = vrcp.pop %v1154
      %v1156 = vmul.f32 %v1154, %v1155
      %v1157 = vsub.f32 1.0, %v1156
      %v1158 = vmul.f32 %v1155, %v1157
      %v1159 = vadd.f32 %v1155, %v1158
      %vm1160 = vweird.f32 %v1154
      %vm1161 = vweird.f32 %v1155
      %vm1162 = vmor %vm1160, %vm1161
      %v1163 = vsel %vm1162, %v1155, %v1159
      %v1164 = vand.u32 2147483647, %v1154
      %vm1165 = vcmp.eq.f32.partialorder %v1164, 8.507059e+37
      %v1166 = vand.u32 %v1154, 2147483648
      %v1167 = vor.u32 1.1754944e-38, %v1166
      %v1168 = vsel %vm1165, %v1167, %v1163
      %v1169 = vmul.f32 1.0, %v1168
      %v1170 = vsel %vm334, %v1150, %v1169
      %v1171 = vmul.f32 %v1170, %v1121
      %1173 = vrot.lane.b32.xlu0 %v1170, 64
      %v1174 = vpop.permute.xlu0 %1173
      %v1176 = vmul.f32 %v1170, %v1174
      %1178 = vrot.lane.b32.xlu0 %v1176, 32
      %v1179 = vpop.permute.xlu0 %1178
      %v1181 = vadd.f32 %v1171, %v1179
      %v1182 = vtanh.pop %v1181
      %1184 = vrot.lane.b32.xlu0 %v1182, 64
      %v1185 = vpop.permute.xlu0 %1184
      %v1187 = vmul.f32 %v1170, %v1185
      %v1188 = vld [vmem:[%s558] sm:$0xff]
      %v1189 = vpack.c.bf16 %v1187, %v1187
      %1191 = vrot.lane.b32.xlu0 %v1189, 32
      %v1192 = vpop.permute.xlu0 %1191
      %v1194 = vsel %vm426, %v1192, 0
      %1196 = vmatpush.bf16.msra.mxu0 0
      %1197 = vmatpush.bf16.msra.mxu0 0
      %1198 = vmatpush.bf16.msra.mxu0 0
      %1199 = vmatpush.bf16.msra.mxu0 0
      %1200 = vmatpush.bf16.msra.mxu0 0
      %1201 = vmatpush.bf16.msra.mxu0 0
      %1202 = vmatpush.bf16.msra.mxu0 %v1066
      %1203 = vmatpush.bf16.msra.mxu0 %v1065
      %1204 = vmatmul.bf16.gmra.mxu0 %v1194
      %v1205 = vpop.f32.mrf.mxu0
      %v1206 = vadd.f32 0.0, %v1205
      %v1207 = vpop.f32.mrf.mxu0
      %1208 = vdwg.mxu0
      %v1209 = vadd.f32 %v1188, %v1206
      %v1210 = vtanh.pop %v1209
      %v1211 = vxor.u32 %v1209, 2147483648
      %v1212 = vmul.f32 %v1211, 1.442695
      %v1213 = vpow.pop %v1212
      %v1214 = vadd.f32 %v1213, 1.0
      %v1215 = vrcp.pop %v1214
      %v1216 = vmul.f32 %v1214, %v1215
      %v1217 = vsub.f32 1.0, %v1216
      %v1218 = vmul.f32 %v1215, %v1217
      %v1219 = vadd.f32 %v1215, %v1218
      %vm1220 = vweird.f32 %v1214
      %vm1221 = vweird.f32 %v1215
      %vm1222 = vmor %vm1220, %vm1221
      %v1223 = vsel %vm1222, %v1215, %v1219
      %v1224 = vand.u32 2147483647, %v1214
      %vm1225 = vcmp.eq.f32.partialorder %v1224, 8.507059e+37
      %v1226 = vand.u32 %v1214, 2147483648
      %v1227 = vor.u32 1.1754944e-38, %v1226
      %v1228 = vsel %vm1225, %v1227, %v1223
      %v1229 = vmul.f32 1.0, %v1228
      %v1230 = vsel %vm334, %v1210, %v1229
      %v1231 = vmul.f32 %v1230, %v1181
      %1233 = vrot.lane.b32.xlu0 %v1230, 64
      %v1234 = vpop.permute.xlu0 %1233
      %v1236 = vmul.f32 %v1230, %v1234
      %1238 = vrot.lane.b32.xlu0 %v1236, 32
      %v1239 = vpop.permute.xlu0 %1238
      %v1241 = vadd.f32 %v1231, %v1239
      %v1242 = vtanh.pop %v1241
      %1244 = vrot.lane.b32.xlu0 %v1242, 64
      %v1245 = vpop.permute.xlu0 %1244
      %v1247 = vmul.f32 %v1230, %v1245
      %v1248 = vld [vmem:[%s625] sm:$0xff]
      %v1249 = vpack.c.bf16 %v1247, %v1247
      %1251 = vrot.lane.b32.xlu0 %v1249, 32
      %v1252 = vpop.permute.xlu0 %1251
      %v1254 = vsel %vm426, %v1252, 0
      %1256 = vmatpush.bf16.msra.mxu0 0
      %1257 = vmatpush.bf16.msra.mxu0 0
      %1258 = vmatpush.bf16.msra.mxu0 0
      %1259 = vmatpush.bf16.msra.mxu0 0
      %1260 = vmatpush.bf16.msra.mxu0 0
      %1261 = vmatpush.bf16.msra.mxu0 0
      %1262 = vmatpush.bf16.msra.mxu0 %v1066
      %1263 = vmatpush.bf16.msra.mxu0 %v1065
      %1264 = vmatmul.bf16.gmra.mxu0 %v1254
      %v1265 = vpop.f32.mrf.mxu0
      %v1266 = vadd.f32 0.0, %v1265
      %v1267 = vpop.f32.mrf.mxu0
      %1268 = vdwg.mxu0
      %v1269 = vadd.f32 %v1248, %v1266
      %v1270 = vtanh.pop %v1269
      %v1271 = vxor.u32 %v1269, 2147483648
      %v1272 = vmul.f32 %v1271, 1.442695
      %v1273 = vpow.pop %v1272
      %v1274 = vadd.f32 %v1273, 1.0
      %v1275 = vrcp.pop %v1274
      %v1276 = vmul.f32 %v1274, %v1275
      %v1277 = vsub.f32 1.0, %v1276
      %v1278 = vmul.f32 %v1275, %v1277
      %v1279 = vadd.f32 %v1275, %v1278
      %vm1280 = vweird.f32 %v1274
      %vm1281 = vweird.f32 %v1275
      %vm1282 = vmor %vm1280, %vm1281
      %v1283 = vsel %vm1282, %v1275, %v1279
      %v1284 = vand.u32 2147483647, %v1274
      %vm1285 = vcmp.eq.f32.partialorder %v1284, 8.507059e+37
      %v1286 = vand.u32 %v1274, 2147483648
      %v1287 = vor.u32 1.1754944e-38, %v1286
      %v1288 = vsel %vm1285, %v1287, %v1283
      %v1289 = vmul.f32 1.0, %v1288
      %v1290 = vsel %vm334, %v1270, %v1289
      %v1291 = vmul.f32 %v1290, %v1241
      %1293 = vrot.lane.b32.xlu0 %v1290, 64
      %v1294 = vpop.permute.xlu0 %1293
      %v1296 = vmul.f32 %v1290, %v1294
      %1298 = vrot.lane.b32.xlu0 %v1296, 32
      %v1299 = vpop.permute.xlu0 %1298
      %v1301 = vadd.f32 %v1291, %v1299
      %v1302 = vtanh.pop %v1301
      %1304 = vrot.lane.b32.xlu0 %v1302, 64
      %v1305 = vpop.permute.xlu0 %1304
      %v1307 = vmul.f32 %v1290, %v1305
      %v1308 = vld [vmem:[%s692] sm:$0xff]
      %v1309 = vpack.c.bf16 %v1307, %v1307
      %1311 = vrot.lane.b32.xlu0 %v1309, 32
      %v1312 = vpop.permute.xlu0 %1311
      %v1314 = vsel %vm426, %v1312, 0
      %1316 = vmatpush.bf16.msra.mxu0 0
      %1317 = vmatpush.bf16.msra.mxu0 0
      %1318 = vmatpush.bf16.msra.mxu0 0
      %1319 = vmatpush.bf16.msra.mxu0 0
      %1320 = vmatpush.bf16.msra.mxu0 0
      %1321 = vmatpush.bf16.msra.mxu0 0
      %1322 = vmatpush.bf16.msra.mxu0 %v1066
      %1323 = vmatpush.bf16.msra.mxu0 %v1065
      %1324 = vmatmul.bf16.gmra.mxu0 %v1314
      %v1325 = vpop.f32.mrf.mxu0
      %v1326 = vadd.f32 0.0, %v1325
      %v1327 = vpop.f32.mrf.mxu0
      %1328 = vdwg.mxu0
      %v1329 = vadd.f32 %v1308, %v1326
      %v1330 = vtanh.pop %v1329
      %v1331 = vxor.u32 %v1329, 2147483648
      %v1332 = vmul.f32 %v1331, 1.442695
      %v1333 = vpow.pop %v1332
      %v1334 = vadd.f32 %v1333, 1.0
      %v1335 = vrcp.pop %v1334
      %v1336 = vmul.f32 %v1334, %v1335
      %v1337 = vsub.f32 1.0, %v1336
      %v1338 = vmul.f32 %v1335, %v1337
      %v1339 = vadd.f32 %v1335, %v1338
      %vm1340 = vweird.f32 %v1334
      %vm1341 = vweird.f32 %v1335
      %vm1342 = vmor %vm1340, %vm1341
      %v1343 = vsel %vm1342, %v1335, %v1339
      %v1344 = vand.u32 2147483647, %v1334
      %vm1345 = vcmp.eq.f32.partialorder %v1344, 8.507059e+37
      %v1346 = vand.u32 %v1334, 2147483648
      %v1347 = vor.u32 1.1754944e-38, %v1346
      %v1348 = vsel %vm1345, %v1347, %v1343
      %v1349 = vmul.f32 1.0, %v1348
      %v1350 = vsel %vm334, %v1330, %v1349
      %v1351 = vmul.f32 %v1350, %v1301
      %1353 = vrot.lane.b32.xlu0 %v1350, 64
      %v1354 = vpop.permute.xlu0 %1353
      %v1356 = vmul.f32 %v1350, %v1354
      %1358 = vrot.lane.b32.xlu0 %v1356, 32
      %v1359 = vpop.permute.xlu0 %1358
      %v1361 = vadd.f32 %v1351, %v1359
      %v1362 = vtanh.pop %v1361
      %1364 = vrot.lane.b32.xlu0 %v1362, 64
      %v1365 = vpop.permute.xlu0 %1364
      %v1367 = vmul.f32 %v1350, %v1365
      %v1368 = vld [vmem:[%s759] sm:$0xff]
      %v1369 = vpack.c.bf16 %v1367, %v1367
      %1371 = vrot.lane.b32.xlu0 %v1369, 32
      %v1372 = vpop.permute.xlu0 %1371
      %v1374 = vsel %vm426, %v1372, 0
      %1376 = vmatpush.bf16.msra.mxu0 0
      %1377 = vmatpush.bf16.msra.mxu0 0
      %1378 = vmatpush.bf16.msra.mxu0 0
      %1379 = vmatpush.bf16.msra.mxu0 0
      %1380 = vmatpush.bf16.msra.mxu0 0
      %1381 = vmatpush.bf16.msra.mxu0 0
      %1382 = vmatpush.bf16.msra.mxu0 %v1066
      %1383 = vmatpush.bf16.msra.mxu0 %v1065
      %1384 = vmatmul.bf16.gmra.mxu0 %v1374
      %v1385 = vpop.f32.mrf.mxu0
      %v1386 = vadd.f32 0.0, %v1385
      %v1387 = vpop.f32.mrf.mxu0
      %1388 = vdwg.mxu0
      %v1389 = vadd.f32 %v1368, %v1386
      %v1390 = vtanh.pop %v1389
      %v1391 = vxor.u32 %v1389, 2147483648
      %v1392 = vmul.f32 %v1391, 1.442695
      %v1393 = vpow.pop %v1392
      %v1394 = vadd.f32 %v1393, 1.0
      %v1395 = vrcp.pop %v1394
      %v1396 = vmul.f32 %v1394, %v1395
      %v1397 = vsub.f32 1.0, %v1396
      %v1398 = vmul.f32 %v1395, %v1397
      %v1399 = vadd.f32 %v1395, %v1398
      %vm1400 = vweird.f32 %v1394
      %vm1401 = vweird.f32 %v1395
      %vm1402 = vmor %vm1400, %vm1401
      %v1403 = vsel %vm1402, %v1395, %v1399
      %v1404 = vand.u32 2147483647, %v1394
      %vm1405 = vcmp.eq.f32.partialorder %v1404, 8.507059e+37
      %v1406 = vand.u32 %v1394, 2147483648
      %v1407 = vor.u32 1.1754944e-38, %v1406
      %v1408 = vsel %vm1405, %v1407, %v1403
      %v1409 = vmul.f32 1.0, %v1408
      %v1410 = vsel %vm334, %v1390, %v1409
      %v1411 = vmul.f32 %v1410, %v1361
      %1413 = vrot.lane.b32.xlu0 %v1410, 64
      %v1414 = vpop.permute.xlu0 %1413
      %v1416 = vmul.f32 %v1410, %v1414
      %1418 = vrot.lane.b32.xlu0 %v1416, 32
      %v1419 = vpop.permute.xlu0 %1418
      %v1421 = vadd.f32 %v1411, %v1419
      %v1422 = vtanh.pop %v1421
      %1424 = vrot.lane.b32.xlu0 %v1422, 64
      %v1425 = vpop.permute.xlu0 %1424
      %v1427 = vmul.f32 %v1410, %v1425
      %v1428 = vld [vmem:[%s826] sm:$0xff]
      %v1429 = vpack.c.bf16 %v1427, %v1427
      %1431 = vrot.lane.b32.xlu0 %v1429, 32
      %v1432 = vpop.permute.xlu0 %1431
      %v1434 = vsel %vm426, %v1432, 0
      %1436 = vmatpush.bf16.msra.mxu0 0
      %1437 = vmatpush.bf16.msra.mxu0 0
      %1438 = vmatpush.bf16.msra.mxu0 0
      %1439 = vmatpush.bf16.msra.mxu0 0
      %1440 = vmatpush.bf16.msra.mxu0 0
      %1441 = vmatpush.bf16.msra.mxu0 0
      %1442 = vmatpush.bf16.msra.mxu0 %v1066
      %1443 = vmatpush.bf16.msra.mxu0 %v1065
      %1444 = vmatmul.bf16.gmra.mxu0 %v1434
      %v1445 = vpop.f32.mrf.mxu0
      %v1446 = vadd.f32 0.0, %v1445
      %v1447 = vpop.f32.mrf.mxu0
      %1448 = vdwg.mxu0
      %v1449 = vadd.f32 %v1428, %v1446
      %v1450 = vtanh.pop %v1449
      %v1451 = vxor.u32 %v1449, 2147483648
      %v1452 = vmul.f32 %v1451, 1.442695
      %v1453 = vpow.pop %v1452
      %v1454 = vadd.f32 %v1453, 1.0
      %v1455 = vrcp.pop %v1454
      %v1456 = vmul.f32 %v1454, %v1455
      %v1457 = vsub.f32 1.0, %v1456
      %v1458 = vmul.f32 %v1455, %v1457
      %v1459 = vadd.f32 %v1455, %v1458
      %vm1460 = vweird.f32 %v1454
      %vm1461 = vweird.f32 %v1455
      %vm1462 = vmor %vm1460, %vm1461
      %v1463 = vsel %vm1462, %v1455, %v1459
      %v1464 = vand.u32 2147483647, %v1454
      %vm1465 = vcmp.eq.f32.partialorder %v1464, 8.507059e+37
      %v1466 = vand.u32 %v1454, 2147483648
      %v1467 = vor.u32 1.1754944e-38, %v1466
      %v1468 = vsel %vm1465, %v1467, %v1463
      %v1469 = vmul.f32 1.0, %v1468
      %v1470 = vsel %vm334, %v1450, %v1469
      %v1471 = vmul.f32 %v1470, %v1421
      %1473 = vrot.lane.b32.xlu0 %v1470, 64
      %v1474 = vpop.permute.xlu0 %1473
      %v1476 = vmul.f32 %v1470, %v1474
      %1478 = vrot.lane.b32.xlu0 %v1476, 32
      %v1479 = vpop.permute.xlu0 %1478
      %v1481 = vadd.f32 %v1471, %v1479
      %v1482 = vtanh.pop %v1481
      %1484 = vrot.lane.b32.xlu0 %v1482, 64
      %v1485 = vpop.permute.xlu0 %1484
      %v1487 = vmul.f32 %v1470, %v1485
      %v1488 = vld [vmem:[%s893] sm:$0xff]
      %v1489 = vpack.c.bf16 %v1487, %v1487
      %1491 = vrot.lane.b32.xlu0 %v1489, 32
      %v1492 = vpop.permute.xlu0 %1491
      %v1494 = vsel %vm426, %v1492, 0
      %1496 = vmatpush.bf16.msra.mxu0 0
      %1497 = vmatpush.bf16.msra.mxu0 0
      %1498 = vmatpush.bf16.msra.mxu0 0
      %1499 = vmatpush.bf16.msra.mxu0 0
      %1500 = vmatpush.bf16.msra.mxu0 0
      %1501 = vmatpush.bf16.msra.mxu0 0
      %1502 = vmatpush.bf16.msra.mxu0 %v1066
      %1503 = vmatpush.bf16.msra.mxu0 %v1065
      %1504 = vmatmul.bf16.gmra.mxu0 %v1494
      %v1505 = vpop.f32.mrf.mxu0
      %v1506 = vadd.f32 0.0, %v1505
      %v1507 = vpop.f32.mrf.mxu0
      %1508 = vdwg.mxu0
      %v1509 = vadd.f32 %v1488, %v1506
      %v1510 = vtanh.pop %v1509
      %v1511 = vxor.u32 %v1509, 2147483648
      %v1512 = vmul.f32 %v1511, 1.442695
      %v1513 = vpow.pop %v1512
      %v1514 = vadd.f32 %v1513, 1.0
      %v1515 = vrcp.pop %v1514
      %v1516 = vmul.f32 %v1514, %v1515
      %v1517 = vsub.f32 1.0, %v1516
      %v1518 = vmul.f32 %v1515, %v1517
      %v1519 = vadd.f32 %v1515, %v1518
      %vm1520 = vweird.f32 %v1514
      %vm1521 = vweird.f32 %v1515
      %vm1522 = vmor %vm1520, %vm1521
      %v1523 = vsel %vm1522, %v1515, %v1519
      %v1524 = vand.u32 2147483647, %v1514
      %vm1525 = vcmp.eq.f32.partialorder %v1524, 8.507059e+37
      %v1526 = vand.u32 %v1514, 2147483648
      %v1527 = vor.u32 1.1754944e-38, %v1526
      %v1528 = vsel %vm1525, %v1527, %v1523
      %v1529 = vmul.f32 1.0, %v1528
      %v1530 = vsel %vm334, %v1510, %v1529
      %v1531 = vmul.f32 %v1530, %v1481
      %1533 = vrot.lane.b32.xlu0 %v1530, 64
      %v1534 = vpop.permute.xlu0 %1533
      %v1536 = vmul.f32 %v1530, %v1534
      %1538 = vrot.lane.b32.xlu0 %v1536, 32
      %v1539 = vpop.permute.xlu0 %1538
      %v1541 = vadd.f32 %v1531, %v1539
      %v1542 = vtanh.pop %v1541
      %1544 = vrot.lane.b32.xlu0 %v1542, 64
      %v1545 = vpop.permute.xlu0 %1544
      %v1547 = vmul.f32 %v1530, %v1545
      %1549 = vrot.lane.b32.xlu0 %v1547, 32
      %v1550 = vpop.permute.xlu0 %1549
      %1552 = vst.msk [vmem:[%s1051] sm:$0xff] %vm426, %v1550
      %1554 = vrot.lane.b32.xlu0 %v1541, 96
      %v1555 = vpop.permute.xlu0 %1554
      %1557 = vst.msk [vmem:[%s1053] sm:$0xff] %vm426, %v1555
      %p1558 = scmp.eq.s32.totalorder %s20, 1
      // Predicated region
      $region61: #{simple_lstm_forward.1} parent=55 // pred_check
        %p1559 = pneg %p1558
      $region62: #{simple_lstm_forward.1} parent=55 // pred_check_branch
        %1561 = sbr.rel (%p1559) target = $region64
      $region63: #{simple_lstm_forward.1} parent=55 // pred_region
        %v1562 = vld [vmem:[%s1051] sm:$0xff]
        %v1563 = vpack.c.bf16 %v1562, %v1562
        %v1564 = vld [vmem:[%s7] sm:$0xf]
        %v1565 = vld [vmem:[%s7 + $0x4] sm:$0xf]
        %v1566 = vld [vmem:[%s7 + $0x8] sm:$0xf]
        %v1567 = vld [vmem:[%s7 + $0xc] sm:$0xf]
        %v1568 = vld [vmem:[%s8] sm:$0x1]
        %v1570 = vperm.slane %v1568, 0
        %v1576 = vunpack.c.l.b16 %v1564
        %v1577 = vunpack.c.l.b16 %v1565
        %v1578 = vunpack.c.l.b16 %v1566
        %v1579 = vunpack.c.l.b16 %v1567
        %v1580 = vpack.c.b16 %v1577, %v1576
        %v1581 = vpack.c.b16 %v1579, %v1578
        %v1585 = vsel %vm426, %v1563, 0
        %1587 = vmatpush.bf16.msra.mxu0 0
        %1588 = vmatpush.bf16.msra.mxu0 0
        %1589 = vmatpush.bf16.msra.mxu0 0
        %1590 = vmatpush.bf16.msra.mxu0 0
        %1591 = vmatpush.bf16.msra.mxu0 0
        %1592 = vmatpush.bf16.msra.mxu0 0
        %1593 = vmatpush.bf16.msra.mxu0 %v1581
        %1594 = vmatpush.bf16.msra.mxu0 %v1580
        %1595 = vmatmul.bf16.gmra.mxu0 %v1585
        %v1596 = vpop.f32.mrf.mxu0
        %v1597 = vadd.f32 %v1570, %v1596
        %v1598 = vpop.f32.mrf.mxu0
        %1599 = vdwg.mxu0
        %vm1600 = vcmask 15360
        %v1601 = vsel %vm1600, %v1597, -inf
        %1602 = vmax.xlane.f32.xlu0 %v1601
        %v1603 = vpop.xlane.xlu0 %1602
        %v1604 = vsub.f32 %v1597, %v1603
        %v1605 = vmul.f32 %v1604, 1.442695
        %v1606 = vpow.pop %v1605
        %v1607 = vsel %vm1600, %v1606, 0.0
        %1608 = vadd.xlane.f32.xlu0 %v1607
        %v1609 = vpop.xlane.xlu0 %1608
        %v1610 = vrcp.pop %v1609
        %v1611 = vmul.f32 %v1609, %v1610
        %v1612 = vsub.f32 1.0, %v1611
        %v1613 = vmul.f32 %v1610, %v1612
        %v1614 = vadd.f32 %v1610, %v1613
        %vm1615 = vweird.f32 %v1609
        %vm1616 = vweird.f32 %v1610
        %vm1617 = vmor %vm1615, %vm1616
        %v1618 = vsel %vm1617, %v1610, %v1614
        %v1619 = vand.u32 2147483647, %v1609
        %vm1620 = vcmp.eq.f32.partialorder %v1619, 8.507059e+37
        %v1621 = vand.u32 %v1609, 2147483648
        %v1622 = vor.u32 1.1754944e-38, %v1621
        %v1623 = vsel %vm1620, %v1622, %v1618
        %v1624 = vmul.f32 %v1606, %v1623
        %1625 = vst.msk [vmem:[%s9] sm:$0xff] %vm1600, %v1624
      $region64: #{simple_lstm_forward.1} parent=55 // pred_fallthru
        _
      // Predicated region
      $region65: #{simple_lstm_forward.1} parent=55 // pred_check
        %p1626 = pneg %p227
      $region66: #{simple_lstm_forward.1} parent=55 // pred_check_branch
        %1628 = sbr.rel (%p1626) target = $region68
      $region67: #{simple_lstm_forward.1} parent=55 // pred_region
        _
      $region68: #{simple_lstm_forward.1} parent=55 // pred_fallthru
        _
      // Predicated region
      $region69: #{simple_lstm_forward.1} parent=55 // pred_check
        %p1629 = pneg %p227
      $region70: #{simple_lstm_forward.1} parent=55 // pred_check_branch
        %1631 = sbr.rel (%p1629) target = $region72
      $region71: #{simple_lstm_forward.1} parent=55 // pred_region
        _
      $region72: #{simple_lstm_forward.1} parent=55 // pred_fallthru
        _
    $region56: #{simple_lstm_forward.1} parent=5 // pred_fallthru
      _
    %p1632 = scmp.le.s32.totalorder 2, %s15
    // Predicated region
    $region73: #{simple_lstm_forward.1} parent=5 // pred_check
      %p1633 = pneg %p1632
    $region74: #{simple_lstm_forward.1} parent=5 // pred_check_branch
      %1635 = sbr.rel (%p1633) target = $region76
    $region75: #{simple_lstm_forward.1} parent=5 // pred_region
      %s1636 = ssub.s32 %s15, 2
    $region76: #{simple_lstm_forward.1} parent=5 // pred_fallthru
      _
  $region6: #{simple_lstm_forward.1} parent=0 // loop_footer
    %s19 = sadd.s32 1, %s15
  $region7: #{simple_lstm_forward.1} parent=0 // loop_footer_branch
    %14 = sbr.rel target = $region3
  $region8: #{simple_lstm_forward.1} parent=0 // loop_exit
    _

</llo_original>
